<compile_context>
chip_gen: v7x
topology: tpu7x:2x2x1
jax: 0.10.0
libtpu: 0.0.40
codegen_flags: <defaults>
</compile_context>

<pallas_src>
import math
import functools

import jax
import jax.numpy as jnp
from jax.experimental import pallas as pl
from jax.experimental.pallas import tpu as pltpu


# ----------------------------------------------------------------------------
# In-kernel math helpers (always f32)
# ----------------------------------------------------------------------------

def _gelu_f32(x):
    # tanh-approx GELU; math stays in f32 even when data is bf16.
    c = math.sqrt(2.0 / math.pi)
    return 0.5 * x * (1.0 + jnp.tanh(c * (x + 0.044715 * x * x * x)))


def _layernorm_f32(x, gamma, beta, eps):
    g = gamma.astype(jnp.float32)
    b = beta.astype(jnp.float32)
    mu = jnp.mean(x, axis=-1, keepdims=True)
    var = jnp.mean(jnp.square(x - mu), axis=-1, keepdims=True)
    return (x - mu) * jax.lax.rsqrt(var + eps) * g + b


# ----------------------------------------------------------------------------
# Kernel 1: embedding LayerNorm (no residual)
# ----------------------------------------------------------------------------

def _embed_ln_kernel(x_ref, g_ref, b_ref, o_ref, *, eps):
    x = x_ref[...].astype(jnp.float32)                       # [S, H]
    o_ref[...] = _layernorm_f32(x, g_ref[...], b_ref[...], eps).astype(o_ref.dtype)


def embed_layernorm(x, gamma, beta, eps=1e-12):
    """x: [B, S, H] f32 -> LayerNorm(x) as [B, S, H] bf16."""
    B, S, H = x.shape
    kernel = functools.partial(_embed_ln_kernel, eps=eps)
    return pl.pallas_call(
        kernel,
        out_shape=jax.ShapeDtypeStruct((B, S, H), jnp.bfloat16),
        grid=(B,),
        in_specs=[
            pl.BlockSpec((None, S, H), lambda b: (b, 0, 0)),
            pl.BlockSpec((1, H), lambda b: (0, 0)),
            pl.BlockSpec((1, H), lambda b: (0, 0)),
        ],
        out_specs=pl.BlockSpec((None, S, H), lambda b: (b, 0, 0)),
        compiler_params=pltpu.CompilerParams(dimension_semantics=("parallel",)),
    )(x, gamma, beta)


# ----------------------------------------------------------------------------
# Kernel 2: one fully fused transformer layer
#   QKV -> per-head attention -> output proj -> +res -> LN1 -> FFN -> +res -> LN2
# ----------------------------------------------------------------------------

def _layer_kernel(x_ref, mask_ref, wqkv_ref, bqkv_ref, wo_ref, bo_ref,
                  ln1g_ref, ln1b_ref, w1_ref, b1_ref, w2_ref, b2_ref,
                  ln2g_ref, ln2b_ref, o_ref, *, num_heads, scale, eps):
    S, H = x_ref.shape
    dH = H // num_heads

    x_bf = x_ref[...]                                        # [S, H] bf16
    x_f32 = x_bf.astype(jnp.float32)
    mask_add = mask_ref[...]                                 # [1, S] f32 additive mask

    # Fused QKV projection (one MXU matmul instead of three).
    qkv = jnp.dot(x_bf, wqkv_ref[...], preferred_element_type=jnp.float32)
    qkv = qkv + bqkv_ref[...].astype(jnp.float32)            # [S, 3H] f32

    # Per-head attention; output projection folded per head so the lane-narrow
    # [S, dH] context never needs to be concatenated / stored.
    attn = jnp.zeros((S, H), jnp.float32)
    for h in range(num_heads):
        q = qkv[:, h * dH:(h + 1) * dH]                      # [S, dH]
        k = qkv[:, H + h * dH:H + (h + 1) * dH]              # [S, dH]
        v = qkv[:, 2 * H + h * dH:2 * H + (h + 1) * dH]      # [S, dH]
        s = jax.lax.dot_general(q, k, (((1,), (1,)), ((), ())),
                                preferred_element_type=jnp.float32)   # [S, S]
        s = s * scale + mask_add
        s = s - jnp.max(s, axis=-1, keepdims=True)
        p = jnp.exp(s)
        p = p * pl.reciprocal(jnp.sum(p, axis=-1, keepdims=True), approx=True)
        ctx_h = jnp.dot(p, v, preferred_element_type=jnp.float32)     # [S, dH]
        # ctx @ Wo == sum_h ctx_h @ Wo[h*dH:(h+1)*dH, :]
        attn = attn + jnp.dot(ctx_h.astype(jnp.bfloat16),
                              wo_ref[h * dH:(h + 1) * dH, :],
                              preferred_element_type=jnp.float32)
    attn = attn + bo_ref[...].astype(jnp.float32)

    h1 = _layernorm_f32(attn + x_f32, ln1g_ref[...], ln1b_ref[...], eps)

    # FFN: w1 + GELU + w2 kept entirely in VMEM (no HBM bounce of [S, INTER]).
    ff = jnp.dot(h1.astype(jnp.bfloat16), w1_ref[...],
                 preferred_element_type=jnp.float32)
    ff = _gelu_f32(ff + b1_ref[...].astype(jnp.float32))
    ff2 = jnp.dot(ff.astype(jnp.bfloat16), w2_ref[...],
                  preferred_element_type=jnp.float32)
    ff2 = ff2 + b2_ref[...].astype(jnp.float32)

    out = _layernorm_f32(ff2 + h1, ln2g_ref[...], ln2b_ref[...], eps)
    o_ref[...] = out.astype(o_ref.dtype)


def transformer_layer(x, mask_add, layer, *, num_heads, scale, eps=1e-12):
    """x: [B, S, H] bf16, mask_add: [B, 1, S] f32 -> [B, S, H] bf16."""
    B, S, H = x.shape
    inter = layer["w1"].shape[1]
    kernel = functools.partial(_layer_kernel, num_heads=num_heads,
                               scale=scale, eps=eps)
    vec = lambda n: pl.BlockSpec((1, n), lambda b: (0, 0))
    mat = lambda r, c: pl.BlockSpec((r, c), lambda b: (0, 0))
    return pl.pallas_call(
        kernel,
        out_shape=jax.ShapeDtypeStruct((B, S, H), jnp.bfloat16),
        grid=(B,),
        in_specs=[
            pl.BlockSpec((None, S, H), lambda b: (b, 0, 0)),   # x
            pl.BlockSpec((None, 1, S), lambda b: (b, 0, 0)),   # additive mask
            mat(H, 3 * H), vec(3 * H),                         # wqkv, bqkv
            mat(H, H), vec(H),                                 # wo, bo
            vec(H), vec(H),                                    # ln1 gamma, beta
            mat(H, inter), vec(inter),                         # w1, b1
            mat(inter, H), vec(H),                             # w2, b2
            vec(H), vec(H),                                    # ln2 gamma, beta
        ],
        out_specs=pl.BlockSpec((None, S, H), lambda b: (b, 0, 0)),
        compiler_params=pltpu.CompilerParams(dimension_semantics=("parallel",)),
    )(x, mask_add,
      layer["wqkv"], layer["bqkv"], layer["wo"], layer["bo"],
      layer["ln1_g"], layer["ln1_b"], layer["w1"], layer["b1"],
      layer["w2"], layer["b2"], layer["ln2_g"], layer["ln2_b"])


# ----------------------------------------------------------------------------
# Kernel 3: fused pooler (tanh) + classifier + argmax
# ----------------------------------------------------------------------------

def _head_kernel(cls_ref, pw_ref, pb_ref, cw_ref, cb_ref, logit_ref, pred_ref):
    pooled = jnp.dot(cls_ref[...], pw_ref[...],
                     preferred_element_type=jnp.float32)
    pooled = jnp.tanh(pooled + pb_ref[...].astype(jnp.float32))       # [B, H] f32
    y = jnp.dot(pooled.astype(jnp.bfloat16), cw_ref[...],
                preferred_element_type=jnp.float32)
    y = y + cb_ref[...].astype(jnp.float32)                           # [B, R] f32
    logit_ref[...] = y
    # argmax over last dim (first index on ties)
    idx = jax.lax.broadcasted_iota(jnp.int32, y.shape, 1)
    maxv = jnp.max(y, axis=-1, keepdims=True)
    cand = jnp.where(y == maxv, idx, jnp.int32(y.shape[-1]))
    pred_ref[...] = jnp.min(cand, axis=-1, keepdims=True)


def pooler_classifier(cls, pool_w, pool_b, cls_w, cls_b):
    """cls: [B, H] bf16 -> (logits [B, R] f32, pred [B] int32)."""
    B, H = cls.shape
    R = cls_w.shape[1]
    logits, pred = pl.pallas_call(
        _head_kernel,
        out_shape=(jax.ShapeDtypeStruct((B, R), jnp.float32),
                   jax.ShapeDtypeStruct((B, 1), jnp.int32)),
        grid=(1,),
        in_specs=[
            pl.BlockSpec((B, H), lambda i: (0, 0)),
            pl.BlockSpec((H, H), lambda i: (0, 0)),
            pl.BlockSpec((1, H), lambda i: (0, 0)),
            pl.BlockSpec((H, R), lambda i: (0, 0)),
            pl.BlockSpec((1, R), lambda i: (0, 0)),
        ],
        out_specs=(pl.BlockSpec((B, R), lambda i: (0, 0)),
                   pl.BlockSpec((B, 1), lambda i: (0, 0))),
    )(cls, pool_w, pool_b, cls_w, cls_b)
    return logits, pred[:, 0]


# ----------------------------------------------------------------------------
# Synthetic BERT parameters (deterministic init — no checkpoint loading)
# ----------------------------------------------------------------------------

def init_params(key, vocab, max_pos, H, nH, inter, n_layers, n_rel):
    std = 0.02
    keys = jax.random.split(key, 8 + n_layers)

    def norm(k, shape):
        return jax.random.normal(k, shape, jnp.float32) * std

    bf = lambda a: a.astype(jnp.bfloat16)

    params = {
        "tok_emb": norm(keys[0], (vocab, H)),
        "pos_emb": norm(keys[1], (max_pos, H)),
        "type_emb": norm(keys[2], (2, H)),
        "emb_ln_g": jnp.ones((1, H), jnp.bfloat16),
        "emb_ln_b": jnp.zeros((1, H), jnp.bfloat16),
        "pool_w": bf(norm(keys[3], (H, H))),
        "pool_b": jnp.zeros((1, H), jnp.bfloat16),
        "cls_w": bf(norm(keys[4], (H, n_rel))),                 # the nn.Linear head
        "cls_b": jnp.zeros((1, n_rel), jnp.float32),
        "layers": [],
    }
    for li in range(n_layers):
        lk = jax.random.split(keys[8 + li], 4)
        params["layers"].append({
            "wqkv": bf(norm(lk[0], (H, 3 * H))),                # fused Q|K|V
            "bqkv": jnp.zeros((1, 3 * H), jnp.bfloat16),
            "wo": bf(norm(lk[1], (H, H))),
            "bo": jnp.zeros((1, H), jnp.bfloat16),
            "ln1_g": jnp.ones((1, H), jnp.bfloat16),
            "ln1_b": jnp.zeros((1, H), jnp.bfloat16),
            "w1": bf(norm(lk[2], (H, inter))),
            "b1": jnp.zeros((1, inter), jnp.bfloat16),
            "w2": bf(norm(lk[3], (inter, H))),
            "b2": jnp.zeros((1, H), jnp.bfloat16),
            "ln2_g": jnp.ones((1, H), jnp.bfloat16),
            "ln2_b": jnp.zeros((1, H), jnp.bfloat16),
        })
    return params


# ----------------------------------------------------------------------------
# Forward:  (logits, pred) = BERT({'bert_token', 'bert_attention_mask'})
# ----------------------------------------------------------------------------

def bert_forward(params, tokens, attention_mask, *, num_heads):
    B, S = tokens.shape
    H = params["tok_emb"].shape[1]
    dH = H // num_heads
    scale = 1.0 / math.sqrt(dH)

    # Embedding lookups are XLA gather glue; LayerNorm runs in a Pallas kernel
    # (no fake zero residual streamed from HBM).
    emb = (params["tok_emb"][tokens]
           + params["pos_emb"][:S][None, :, :]
           + params["type_emb"][0][None, None, :])             # [B, S, H] f32
    x = embed_layernorm(emb, params["emb_ln_g"], params["emb_ln_b"])   # bf16

    # Additive mask precomputed once per forward: 0 keep / -1e9 masked.
    mask_add = ((attention_mask.astype(jnp.float32) - 1.0) * 1e9).reshape(B, 1, S)

    for layer in params["layers"]:
        x = transformer_layer(x, mask_add, layer,
                              num_heads=num_heads, scale=scale)

    # encoder_output[1] == pooled output: tanh(W_pool @ h_[CLS] + b_pool)
    cls = x[:, 0, :]                                            # [B, H] bf16
    logits, pred = pooler_classifier(cls, params["pool_w"], params["pool_b"],
                                     params["cls_w"], params["cls_b"])
    return logits, pred


# ----------------------------------------------------------------------------
# Main
# ----------------------------------------------------------------------------

if __name__ == "__main__":
    B, S = 2, 8
    VOCAB, MAXPOS, H, NH, INTER, LAYERS, NREL = 64, 16, 32, 2, 64, 2, 7

    key = jax.random.PRNGKey(0)
    pkey, tkey = jax.random.split(key)

    params = init_params(pkey, VOCAB, MAXPOS, H, NH, INTER, LAYERS, NREL)

    inputs = {
        "bert_token": jax.random.randint(tkey, (B, S), 0, VOCAB, dtype=jnp.int32),
        "bert_attention_mask": jnp.array(
            [[1, 1, 1, 1, 1, 1, 1, 1],
             [1, 1, 1, 1, 1, 1, 0, 0]], dtype=jnp.int32),
    }

    fwd = jax.jit(functools.partial(bert_forward, num_heads=NH))
    logits, pred = fwd(params, inputs["bert_token"],
                       inputs["bert_attention_mask"])
    jax.block_until_ready((logits, pred))

    assert logits.shape == (B, NREL) and pred.shape == (B,)
    print("KERNEL_OK")
</pallas_src>

<mosaic_0001>
module attributes {stable_mosaic.version = 11 : i64} {
  func.func @_head_kernel(%arg0: i32, %arg1: memref<2x32xbf16, #tpu.memory_space<vmem>>, %arg2: memref<32x32xbf16, #tpu.memory_space<vmem>>, %arg3: memref<1x32xbf16, #tpu.memory_space<vmem>>, %arg4: memref<32x7xbf16, #tpu.memory_space<vmem>>, %arg5: memref<1x7xf32, #tpu.memory_space<vmem>>, %arg6: memref<2x7xf32, #tpu.memory_space<vmem>>, %arg7: memref<2x1xi32, #tpu.memory_space<vmem>>) attributes {dimension_semantics = [#tpu.dimension_semantics<arbitrary>], iteration_bounds = array<i64: 1>, scalar_prefetch = 0 : i64, scratch_operands = 0 : i64, tpu.core_type = #tpu.core_type<tc>, window_params = [{pipeline_mode = #tpu.pipeline_mode<synchronous>, transform_indices = @transform_0, window_bounds = array<i64: 2, 32>}, {pipeline_mode = #tpu.pipeline_mode<synchronous>, transform_indices = @transform_1, window_bounds = array<i64: 32, 32>}, {pipeline_mode = #tpu.pipeline_mode<synchronous>, transform_indices = @transform_2, window_bounds = array<i64: 1, 32>}, {pipeline_mode = #tpu.pipeline_mode<synchronous>, transform_indices = @transform_3, window_bounds = array<i64: 32, 7>}, {pipeline_mode = #tpu.pipeline_mode<synchronous>, transform_indices = @transform_4, window_bounds = array<i64: 1, 7>}, {pipeline_mode = #tpu.pipeline_mode<synchronous>, transform_indices = @transform_5, window_bounds = array<i64: 2, 7>}, {pipeline_mode = #tpu.pipeline_mode<synchronous>, transform_indices = @transform_6, window_bounds = array<i64: 2, 1>}]} {
    %c0 = arith.constant 0 : index
    %c0_0 = arith.constant 0 : index
    %0 = vector.load %arg1[%c0, %c0_0] : memref<2x32xbf16, #tpu.memory_space<vmem>>, vector<2x32xbf16>
    %c0_1 = arith.constant 0 : index
    %c0_2 = arith.constant 0 : index
    %1 = vector.load %arg2[%c0_1, %c0_2] : memref<32x32xbf16, #tpu.memory_space<vmem>>, vector<32x32xbf16>
    %cst = arith.constant dense<0.000000e+00> : vector<2x32xf32>
    %2 = tpu.matmul %0, %1, %cst {dimension_numbers = #tpu.dot_dimension_numbers<[1], [0], [0], [1], [0, 0, 1, 1], [], []>} : vector<2x32xbf16>, vector<32x32xbf16>, vector<2x32xf32> -> vector<2x32xf32>
    %c0_3 = arith.constant 0 : index
    %c0_4 = arith.constant 0 : index
    %3 = vector.load %arg3[%c0_3, %c0_4] : memref<1x32xbf16, #tpu.memory_space<vmem>>, vector<1x32xbf16>
    %4 = arith.extf %3 : vector<1x32xbf16> to vector<1x32xf32>
    %5 = vector.broadcast %4 : vector<1x32xf32> to vector<2x32xf32>
    %6 = arith.addf %2, %5 : vector<2x32xf32>
    %7 = math.tanh %6 : vector<2x32xf32>
    %8 = arith.truncf %7 : vector<2x32xf32> to vector<2x32xbf16>
    %c0_5 = arith.constant 0 : index
    %c0_6 = arith.constant 0 : index
    %9 = vector.load %arg4[%c0_5, %c0_6] : memref<32x7xbf16, #tpu.memory_space<vmem>>, vector<32x7xbf16>
    %cst_7 = arith.constant dense<0.000000e+00> : vector<2x7xf32>
    %10 = tpu.matmul %8, %9, %cst_7 {dimension_numbers = #tpu.dot_dimension_numbers<[1], [0], [0], [1], [0, 0, 1, 1], [], []>} : vector<2x32xbf16>, vector<32x7xbf16>, vector<2x7xf32> -> vector<2x7xf32>
    %c0_8 = arith.constant 0 : index
    %c0_9 = arith.constant 0 : index
    %11 = vector.load %arg5[%c0_8, %c0_9] : memref<1x7xf32, #tpu.memory_space<vmem>>, vector<1x7xf32>
    %12 = vector.broadcast %11 : vector<1x7xf32> to vector<2x7xf32>
    %13 = arith.addf %10, %12 : vector<2x7xf32>
    %c0_10 = arith.constant 0 : index
    %c0_11 = arith.constant 0 : index
    %14 = vector.load %arg6[%c0_10, %c0_11] : memref<2x7xf32, #tpu.memory_space<vmem>>, vector<2x7xf32>
    tpu.vector_store %arg6[%c0_10, %c0_11], %13 {strides = array<i32>} : memref<2x7xf32, #tpu.memory_space<vmem>>, vector<2x7xf32>,
    %15 = tpu.iota {dimensions = array<i32: 1>} : vector<2x7xi32>
    %cst_12 = arith.constant dense<0xFF800000> : vector<2xf32>
    %16 = vector.multi_reduction <maximumf>, %13, %cst_12 [1] : vector<2x7xf32> to vector<2xf32>
    %17 = vector.shape_cast %16 : vector<2xf32> to vector<2x1xf32>
    %18 = vector.broadcast %17 : vector<2x1xf32> to vector<2x7xf32>
    %19 = arith.cmpf oeq, %13, %18 : vector<2x7xf32>
    %c7_i32 = arith.constant 7 : i32
    %20 = vector.broadcast %c7_i32 : i32 to vector<2x7xi32>
    %21 = arith.select %19, %15, %20 : vector<2x7xi1>, vector<2x7xi32>
    %cst_13 = arith.constant dense<2147483647> : vector<2xi32>
    %22 = vector.multi_reduction <minsi>, %21, %cst_13 [1] : vector<2x7xi32> to vector<2xi32>
    %23 = vector.shape_cast %22 : vector<2xi32> to vector<2x1xi32>
    %c0_14 = arith.constant 0 : index
    %c0_15 = arith.constant 0 : index
    %24 = vector.load %arg7[%c0_14, %c0_15] : memref<2x1xi32, #tpu.memory_space<vmem>>, vector<2x1xi32>
    tpu.vector_store %arg7[%c0_14, %c0_15], %23 {strides = array<i32>} : memref<2x1xi32, #tpu.memory_space<vmem>>, vector<2x1xi32>,
    return
  }
  func.func @transform_0(%arg0: i32) -> (i32, i32) {
    %c0_i32 = arith.constant 0 : i32
    %c0_i32_0 = arith.constant 0 : i32
    %c0_i32_1 = arith.constant 0 : i32
    return %c0_i32, %c0_i32_0 : i32, i32
  }
  func.func @transform_1(%arg0: i32) -> (i32, i32) {
    %c0_i32 = arith.constant 0 : i32
    %c0_i32_0 = arith.constant 0 : i32
    %c0_i32_1 = arith.constant 0 : i32
    return %c0_i32, %c0_i32_0 : i32, i32
  }
  func.func @transform_2(%arg0: i32) -> (i32, i32) {
    %c0_i32 = arith.constant 0 : i32
    %c0_i32_0 = arith.constant 0 : i32
    %c0_i32_1 = arith.constant 0 : i32
    return %c0_i32, %c0_i32_0 : i32, i32
  }
  func.func @transform_3(%arg0: i32) -> (i32, i32) {
    %c0_i32 = arith.constant 0 : i32
    %c0_i32_0 = arith.constant 0 : i32
    %c0_i32_1 = arith.constant 0 : i32
    return %c0_i32, %c0_i32_0 : i32, i32
  }
  func.func @transform_4(%arg0: i32) -> (i32, i32) {
    %c0_i32 = arith.constant 0 : i32
    %c0_i32_0 = arith.constant 0 : i32
    %c0_i32_1 = arith.constant 0 : i32
    return %c0_i32, %c0_i32_0 : i32, i32
  }
  func.func @transform_5(%arg0: i32) -> (i32, i32) {
    %c0_i32 = arith.constant 0 : i32
    %c0_i32_0 = arith.constant 0 : i32
    %c0_i32_1 = arith.constant 0 : i32
    return %c0_i32, %c0_i32_0 : i32, i32
  }
  func.func @transform_6(%arg0: i32) -> (i32, i32) {
    %c0_i32 = arith.constant 0 : i32
    %c0_i32_0 = arith.constant 0 : i32
    %c0_i32_1 = arith.constant 0 : i32
    return %c0_i32, %c0_i32_0 : i32, i32
  }
}

module attributes {stable_mosaic.version = 11 : i64} {
  func.func @_embed_ln_kernel(%arg0: i32, %arg1: memref<1x8x32xf32, #tpu.memory_space<vmem>>, %arg2: memref<1x32xbf16, #tpu.memory_space<vmem>>, %arg3: memref<1x32xbf16, #tpu.memory_space<vmem>>, %arg4: memref<1x8x32xbf16, #tpu.memory_space<vmem>>) attributes {dimension_semantics = [#tpu.dimension_semantics<parallel>], iteration_bounds = array<i64: 2>, scalar_prefetch = 0 : i64, scratch_operands = 0 : i64, tpu.core_type = #tpu.core_type<tc>, window_params = [{transform_indices = @transform_0, window_bounds = array<i64: 1, 8, 32>}, {pipeline_mode = #tpu.pipeline_mode<synchronous>, transform_indices = @transform_1, window_bounds = array<i64: 1, 32>}, {pipeline_mode = #tpu.pipeline_mode<synchronous>, transform_indices = @transform_2, window_bounds = array<i64: 1, 32>}, {transform_indices = @transform_3, window_bounds = array<i64: 1, 8, 32>}]} {
    %c0 = arith.constant 0 : index
    %c0_0 = arith.constant 0 : index
    %c0_1 = arith.constant 0 : index
    %0 = vector.load %arg1[%c0, %c0_0, %c0_1] : memref<1x8x32xf32, #tpu.memory_space<vmem>>, vector<1x8x32xf32>
    %1 = vector.shape_cast %0 : vector<1x8x32xf32> to vector<8x32xf32>
    %c0_2 = arith.constant 0 : index
    %c0_3 = arith.constant 0 : index
    %2 = vector.load %arg2[%c0_2, %c0_3] : memref<1x32xbf16, #tpu.memory_space<vmem>>, vector<1x32xbf16>
    %c0_4 = arith.constant 0 : index
    %c0_5 = arith.constant 0 : index
    %3 = vector.load %arg3[%c0_4, %c0_5] : memref<1x32xbf16, #tpu.memory_space<vmem>>, vector<1x32xbf16>
    %4 = arith.extf %2 : vector<1x32xbf16> to vector<1x32xf32>
    %5 = arith.extf %3 : vector<1x32xbf16> to vector<1x32xf32>
    %cst = arith.constant dense<0.000000e+00> : vector<8xf32>
    %6 = vector.multi_reduction <add>, %1, %cst [1] : vector<8x32xf32> to vector<8xf32>
    %7 = vector.shape_cast %6 : vector<8xf32> to vector<8x1xf32>
    %cst_6 = arith.constant 3.200000e+01 : f32
    %8 = vector.broadcast %cst_6 : f32 to vector<8x1xf32>
    %9 = arith.divf %7, %8 : vector<8x1xf32>
    %10 = vector.broadcast %9 : vector<8x1xf32> to vector<8x32xf32>
    %11 = arith.subf %1, %10 : vector<8x32xf32>
    %12 = arith.mulf %11, %11 : vector<8x32xf32>
    %cst_7 = arith.constant dense<0.000000e+00> : vector<8xf32>
    %13 = vector.multi_reduction <add>, %12, %cst_7 [1] : vector<8x32xf32> to vector<8xf32>
    %14 = vector.shape_cast %13 : vector<8xf32> to vector<8x1xf32>
    %cst_8 = arith.constant 3.200000e+01 : f32
    %15 = vector.broadcast %cst_8 : f32 to vector<8x1xf32>
    %16 = arith.divf %14, %15 : vector<8x1xf32>
    %17 = vector.broadcast %9 : vector<8x1xf32> to vector<8x32xf32>
    %18 = arith.subf %1, %17 : vector<8x32xf32>
    %cst_9 = arith.constant 9.99999996E-13 : f32
    %19 = vector.broadcast %cst_9 : f32 to vector<8x1xf32>
    %20 = arith.addf %16, %19 : vector<8x1xf32>
    %21 = math.rsqrt %20 : vector<8x1xf32>
    %22 = vector.broadcast %21 : vector<8x1xf32> to vector<8x32xf32>
    %23 = arith.mulf %18, %22 : vector<8x32xf32>
    %24 = vector.broadcast %4 : vector<1x32xf32> to vector<8x32xf32>
    %25 = arith.mulf %23, %24 : vector<8x32xf32>
    %26 = vector.broadcast %5 : vector<1x32xf32> to vector<8x32xf32>
    %27 = arith.addf %25, %26 : vector<8x32xf32>
    %28 = arith.truncf %27 : vector<8x32xf32> to vector<8x32xbf16>
    %c0_10 = arith.constant 0 : index
    %c0_11 = arith.constant 0 : index
    %c0_12 = arith.constant 0 : index
    %29 = vector.load %arg4[%c0_10, %c0_11, %c0_12] : memref<1x8x32xbf16, #tpu.memory_space<vmem>>, vector<1x8x32xbf16>
    %30 = vector.shape_cast %29 : vector<1x8x32xbf16> to vector<8x32xbf16>
    %31 = vector.shape_cast %28 : vector<8x32xbf16> to vector<1x8x32xbf16>
    tpu.vector_store %arg4[%c0_10, %c0_11, %c0_12], %31 {strides = array<i32>} : memref<1x8x32xbf16, #tpu.memory_space<vmem>>, vector<1x8x32xbf16>,
    return
  }
  func.func @transform_0(%arg0: i32) -> (i32, i32, i32) {
    %c0_i32 = arith.constant 0 : i32
    %c0_i32_0 = arith.constant 0 : i32
    %c0_i32_1 = arith.constant 0 : i32
    return %arg0, %c0_i32, %c0_i32_0 : i32, i32, i32
  }
  func.func @transform_1(%arg0: i32) -> (i32, i32) {
    %c0_i32 = arith.constant 0 : i32
    %c0_i32_0 = arith.constant 0 : i32
    %c0_i32_1 = arith.constant 0 : i32
    return %c0_i32, %c0_i32_0 : i32, i32
  }
  func.func @transform_2(%arg0: i32) -> (i32, i32) {
    %c0_i32 = arith.constant 0 : i32
    %c0_i32_0 = arith.constant 0 : i32
    %c0_i32_1 = arith.constant 0 : i32
    return %c0_i32, %c0_i32_0 : i32, i32
  }
  func.func @transform_3(%arg0: i32) -> (i32, i32, i32) {
    %c0_i32 = arith.constant 0 : i32
    %c0_i32_0 = arith.constant 0 : i32
    %c0_i32_1 = arith.constant 0 : i32
    return %arg0, %c0_i32, %c0_i32_0 : i32, i32, i32
  }
}

module attributes {stable_mosaic.version = 11 : i64} {
  func.func @_layer_kernel(%arg0: i32, %arg1: memref<1x8x32xbf16, #tpu.memory_space<vmem>>, %arg2: memref<1x1x8xf32, #tpu.memory_space<vmem>>, %arg3: memref<32x96xbf16, #tpu.memory_space<vmem>>, %arg4: memref<1x96xbf16, #tpu.memory_space<vmem>>, %arg5: memref<32x32xbf16, #tpu.memory_space<vmem>>, %arg6: memref<1x32xbf16, #tpu.memory_space<vmem>>, %arg7: memref<1x32xbf16, #tpu.memory_space<vmem>>, %arg8: memref<1x32xbf16, #tpu.memory_space<vmem>>, %arg9: memref<32x64xbf16, #tpu.memory_space<vmem>>, %arg10: memref<1x64xbf16, #tpu.memory_space<vmem>>, %arg11: memref<64x32xbf16, #tpu.memory_space<vmem>>, %arg12: memref<1x32xbf16, #tpu.memory_space<vmem>>, %arg13: memref<1x32xbf16, #tpu.memory_space<vmem>>, %arg14: memref<1x32xbf16, #tpu.memory_space<vmem>>, %arg15: memref<1x8x32xbf16, #tpu.memory_space<vmem>>) attributes {dimension_semantics = [#tpu.dimension_semantics<parallel>], iteration_bounds = array<i64: 2>, scalar_prefetch = 0 : i64, scratch_operands = 0 : i64, tpu.core_type = #tpu.core_type<tc>, window_params = [{transform_indices = @transform_0, window_bounds = array<i64: 1, 8, 32>}, {transform_indices = @transform_1, window_bounds = array<i64: 1, 1, 8>}, {pipeline_mode = #tpu.pipeline_mode<synchronous>, transform_indices = @transform_2, window_bounds = array<i64: 32, 96>}, {pipeline_mode = #tpu.pipeline_mode<synchronous>, transform_indices = @transform_3, window_bounds = array<i64: 1, 96>}, {pipeline_mode = #tpu.pipeline_mode<synchronous>, transform_indices = @transform_4, window_bounds = array<i64: 32, 32>}, {pipeline_mode = #tpu.pipeline_mode<synchronous>, transform_indices = @transform_5, window_bounds = array<i64: 1, 32>}, {pipeline_mode = #tpu.pipeline_mode<synchronous>, transform_indices = @transform_6, window_bounds = array<i64: 1, 32>}, {pipeline_mode = #tpu.pipeline_mode<synchronous>, transform_indices = @transform_7, window_bounds = array<i64: 1, 32>}, {pipeline_mode = #tpu.pipeline_mode<synchronous>, transform_indices = @transform_8, window_bounds = array<i64: 32, 64>}, {pipeline_mode = #tpu.pipeline_mode<synchronous>, transform_indices = @transform_9, window_bounds = array<i64: 1, 64>}, {pipeline_mode = #tpu.pipeline_mode<synchronous>, transform_indices = @transform_10, window_bounds = array<i64: 64, 32>}, {pipeline_mode = #tpu.pipeline_mode<synchronous>, transform_indices = @transform_11, window_bounds = array<i64: 1, 32>}, {pipeline_mode = #tpu.pipeline_mode<synchronous>, transform_indices = @transform_12, window_bounds = array<i64: 1, 32>}, {pipeline_mode = #tpu.pipeline_mode<synchronous>, transform_indices = @transform_13, window_bounds = array<i64: 1, 32>}, {transform_indices = @transform_14, window_bounds = array<i64: 1, 8, 32>}]} {
    %c0 = arith.constant 0 : index
    %c0_0 = arith.constant 0 : index
    %c0_1 = arith.constant 0 : index
    %0 = vector.load %arg1[%c0, %c0_0, %c0_1] : memref<1x8x32xbf16, #tpu.memory_space<vmem>>, vector<1x8x32xbf16>
    %1 = vector.shape_cast %0 : vector<1x8x32xbf16> to vector<8x32xbf16>
    %2 = arith.extf %1 : vector<8x32xbf16> to vector<8x32xf32>
    %c0_2 = arith.constant 0 : index
    %c0_3 = arith.constant 0 : index
    %c0_4 = arith.constant 0 : index
    %3 = vector.load %arg2[%c0_2, %c0_3, %c0_4] : memref<1x1x8xf32, #tpu.memory_space<vmem>>, vector<1x1x8xf32>
    %4 = vector.shape_cast %3 : vector<1x1x8xf32> to vector<1x8xf32>
    %c0_5 = arith.constant 0 : index
    %c0_6 = arith.constant 0 : index
    %5 = vector.load %arg3[%c0_5, %c0_6] : memref<32x96xbf16, #tpu.memory_space<vmem>>, vector<32x96xbf16>
    %cst = arith.constant dense<0.000000e+00> : vector<8x96xf32>
    %6 = tpu.matmul %1, %5, %cst {dimension_numbers = #tpu.dot_dimension_numbers<[1], [0], [0], [1], [0, 0, 1, 1], [], []>} : vector<8x32xbf16>, vector<32x96xbf16>, vector<8x96xf32> -> vector<8x96xf32>
    %c0_7 = arith.constant 0 : index
    %c0_8 = arith.constant 0 : index
    %7 = vector.load %arg4[%c0_7, %c0_8] : memref<1x96xbf16, #tpu.memory_space<vmem>>, vector<1x96xbf16>
    %8 = arith.extf %7 : vector<1x96xbf16> to vector<1x96xf32>
    %9 = vector.broadcast %8 : vector<1x96xf32> to vector<8x96xf32>
    %10 = arith.addf %6, %9 : vector<8x96xf32>
    %cst_9 = arith.constant 0.000000e+00 : f32
    %11 = vector.broadcast %cst_9 : f32 to vector<8x32xf32>
    %12 = vector.extract_strided_slice %10 {offsets = [0, 0], sizes = [8, 16], strides = [1, 1]} : vector<8x96xf32> to vector<8x16xf32>
    %13 = vector.extract_strided_slice %10 {offsets = [0, 32], sizes = [8, 16], strides = [1, 1]} : vector<8x96xf32> to vector<8x16xf32>
    %14 = vector.extract_strided_slice %10 {offsets = [0, 64], sizes = [8, 16], strides = [1, 1]} : vector<8x96xf32> to vector<8x16xf32>
    %cst_10 = arith.constant dense<0.000000e+00> : vector<8x8xf32>
    %15 = tpu.matmul %12, %13, %cst_10 {dimension_numbers = #tpu.dot_dimension_numbers<[1], [1], [0], [0], [0, 0, 1, 0], [], []>} : vector<8x16xf32>, vector<8x16xf32>, vector<8x8xf32> -> vector<8x8xf32>
    %cst_11 = arith.constant 2.500000e-01 : f32
    %16 = vector.broadcast %cst_11 : f32 to vector<8x8xf32>
    %17 = arith.mulf %15, %16 : vector<8x8xf32>
    %18 = vector.broadcast %4 : vector<1x8xf32> to vector<8x8xf32>
    %19 = arith.addf %17, %18 : vector<8x8xf32>
    %cst_12 = arith.constant dense<0xFF800000> : vector<8xf32>
    %20 = vector.multi_reduction <maximumf>, %19, %cst_12 [1] : vector<8x8xf32> to vector<8xf32>
    %21 = vector.shape_cast %20 : vector<8xf32> to vector<8x1xf32>
    %22 = vector.broadcast %21 : vector<8x1xf32> to vector<8x8xf32>
    %23 = arith.subf %19, %22 : vector<8x8xf32>
    %24 = math.exp %23 : vector<8x8xf32>
    %cst_13 = arith.constant dense<0.000000e+00> : vector<8xf32>
    %25 = vector.multi_reduction <add>, %24, %cst_13 [1] : vector<8x8xf32> to vector<8xf32>
    %26 = vector.shape_cast %25 : vector<8xf32> to vector<8x1xf32>
    %27 = tpu.reciprocal %26 {approx = true} : vector<8x1xf32> -> vector<8x1xf32>
    %28 = vector.broadcast %27 : vector<8x1xf32> to vector<8x8xf32>
    %29 = arith.mulf %24, %28 : vector<8x8xf32>
    %cst_14 = arith.constant dense<0.000000e+00> : vector<8x16xf32>
    %30 = tpu.matmul %29, %14, %cst_14 {dimension_numbers = #tpu.dot_dimension_numbers<[1], [0], [0], [1], [0, 0, 1, 1], [], []>} : vector<8x8xf32>, vector<8x16xf32>, vector<8x16xf32> -> vector<8x16xf32>
    %31 = arith.truncf %30 : vector<8x16xf32> to vector<8x16xbf16>
    %c0_15 = arith.constant 0 : index
    %c0_16 = arith.constant 0 : index
    %32 = vector.load %arg5[%c0_15, %c0_16] : memref<32x32xbf16, #tpu.memory_space<vmem>>, vector<16x32xbf16>
    %cst_17 = arith.constant dense<0.000000e+00> : vector<8x32xf32>
    %33 = tpu.matmul %31, %32, %cst_17 {dimension_numbers = #tpu.dot_dimension_numbers<[1], [0], [0], [1], [0, 0, 1, 1], [], []>} : vector<8x16xbf16>, vector<16x32xbf16>, vector<8x32xf32> -> vector<8x32xf32>
    %34 = arith.addf %11, %33 : vector<8x32xf32>
    %35 = vector.extract_strided_slice %10 {offsets = [0, 16], sizes = [8, 16], strides = [1, 1]} : vector<8x96xf32> to vector<8x16xf32>
    %36 = vector.extract_strided_slice %10 {offsets = [0, 48], sizes = [8, 16], strides = [1, 1]} : vector<8x96xf32> to vector<8x16xf32>
    %37 = vector.extract_strided_slice %10 {offsets = [0, 80], sizes = [8, 16], strides = [1, 1]} : vector<8x96xf32> to vector<8x16xf32>
    %cst_18 = arith.constant dense<0.000000e+00> : vector<8x8xf32>
    %38 = tpu.matmul %35, %36, %cst_18 {dimension_numbers = #tpu.dot_dimension_numbers<[1], [1], [0], [0], [0, 0, 1, 0], [], []>} : vector<8x16xf32>, vector<8x16xf32>, vector<8x8xf32> -> vector<8x8xf32>
    %cst_19 = arith.constant 2.500000e-01 : f32
    %39 = vector.broadcast %cst_19 : f32 to vector<8x8xf32>
    %40 = arith.mulf %38, %39 : vector<8x8xf32>
    %41 = vector.broadcast %4 : vector<1x8xf32> to vector<8x8xf32>
    %42 = arith.addf %40, %41 : vector<8x8xf32>
    %cst_20 = arith.constant dense<0xFF800000> : vector<8xf32>
    %43 = vector.multi_reduction <maximumf>, %42, %cst_20 [1] : vector<8x8xf32> to vector<8xf32>
    %44 = vector.shape_cast %43 : vector<8xf32> to vector<8x1xf32>
    %45 = vector.broadcast %44 : vector<8x1xf32> to vector<8x8xf32>
    %46 = arith.subf %42, %45 : vector<8x8xf32>
    %47 = math.exp %46 : vector<8x8xf32>
    %cst_21 = arith.constant dense<0.000000e+00> : vector<8xf32>
    %48 = vector.multi_reduction <add>, %47, %cst_21 [1] : vector<8x8xf32> to vector<8xf32>
    %49 = vector.shape_cast %48 : vector<8xf32> to vector<8x1xf32>
    %50 = tpu.reciprocal %49 {approx = true} : vector<8x1xf32> -> vector<8x1xf32>
    %51 = vector.broadcast %50 : vector<8x1xf32> to vector<8x8xf32>
    %52 = arith.mulf %47, %51 : vector<8x8xf32>
    %cst_22 = arith.constant dense<0.000000e+00> : vector<8x16xf32>
    %53 = tpu.matmul %52, %37, %cst_22 {dimension_numbers = #tpu.dot_dimension_numbers<[1], [0], [0], [1], [0, 0, 1, 1], [], []>} : vector<8x8xf32>, vector<8x16xf32>, vector<8x16xf32> -> vector<8x16xf32>
    %54 = arith.truncf %53 : vector<8x16xf32> to vector<8x16xbf16>
    %c16 = arith.constant 16 : index
    %c0_23 = arith.constant 0 : index
    %55 = vector.load %arg5[%c16, %c0_23] : memref<32x32xbf16, #tpu.memory_space<vmem>>, vector<16x32xbf16>
    %cst_24 = arith.constant dense<0.000000e+00> : vector<8x32xf32>
    %56 = tpu.matmul %54, %55, %cst_24 {dimension_numbers = #tpu.dot_dimension_numbers<[1], [0], [0], [1], [0, 0, 1, 1], [], []>} : vector<8x16xbf16>, vector<16x32xbf16>, vector<8x32xf32> -> vector<8x32xf32>
    %57 = arith.addf %34, %56 : vector<8x32xf32>
    %c0_25 = arith.constant 0 : index
    %c0_26 = arith.constant 0 : index
    %58 = vector.load %arg6[%c0_25, %c0_26] : memref<1x32xbf16, #tpu.memory_space<vmem>>, vector<1x32xbf16>
    %59 = arith.extf %58 : vector<1x32xbf16> to vector<1x32xf32>
    %60 = vector.broadcast %59 : vector<1x32xf32> to vector<8x32xf32>
    %61 = arith.addf %57, %60 : vector<8x32xf32>
    %62 = arith.addf %61, %2 : vector<8x32xf32>
    %c0_27 = arith.constant 0 : index
    %c0_28 = arith.constant 0 : index
    %63 = vector.load %arg7[%c0_27, %c0_28] : memref<1x32xbf16, #tpu.memory_space<vmem>>, vector<1x32xbf16>
    %c0_29 = arith.constant 0 : index
    %c0_30 = arith.constant 0 : index
    %64 = vector.load %arg8[%c0_29, %c0_30] : memref<1x32xbf16, #tpu.memory_space<vmem>>, vector<1x32xbf16>
    %65 = arith.extf %63 : vector<1x32xbf16> to vector<1x32xf32>
    %66 = arith.extf %64 : vector<1x32xbf16> to vector<1x32xf32>
    %cst_31 = arith.constant dense<0.000000e+00> : vector<8xf32>
    %67 = vector.multi_reduction <add>, %62, %cst_31 [1] : vector<8x32xf32> to vector<8xf32>
    %68 = vector.shape_cast %67 : vector<8xf32> to vector<8x1xf32>
    %cst_32 = arith.constant 3.200000e+01 : f32
    %69 = vector.broadcast %cst_32 : f32 to vector<8x1xf32>
    %70 = arith.divf %68, %69 : vector<8x1xf32>
    %71 = vector.broadcast %70 : vector<8x1xf32> to vector<8x32xf32>
    %72 = arith.subf %62, %71 : vector<8x32xf32>
    %73 = arith.mulf %72, %72 : vector<8x32xf32>
    %cst_33 = arith.constant dense<0.000000e+00> : vector<8xf32>
    %74 = vector.multi_reduction <add>, %73, %cst_33 [1] : vector<8x32xf32> to vector<8xf32>
    %75 = vector.shape_cast %74 : vector<8xf32> to vector<8x1xf32>
    %cst_34 = arith.constant 3.200000e+01 : f32
    %76 = vector.broadcast %cst_34 : f32 to vector<8x1xf32>
    %77 = arith.divf %75, %76 : vector<8x1xf32>
    %78 = vector.broadcast %70 : vector<8x1xf32> to vector<8x32xf32>
    %79 = arith.subf %62, %78 : vector<8x32xf32>
    %cst_35 = arith.constant 9.99999996E-13 : f32
    %80 = vector.broadcast %cst_35 : f32 to vector<8x1xf32>
    %81 = arith.addf %77, %80 : vector<8x1xf32>
    %82 = math.rsqrt %81 : vector<8x1xf32>
    %83 = vector.broadcast %82 : vector<8x1xf32> to vector<8x32xf32>
    %84 = arith.mulf %79, %83 : vector<8x32xf32>
    %85 = vector.broadcast %65 : vector<1x32xf32> to vector<8x32xf32>
    %86 = arith.mulf %84, %85 : vector<8x32xf32>
    %87 = vector.broadcast %66 : vector<1x32xf32> to vector<8x32xf32>
    %88 = arith.addf %86, %87 : vector<8x32xf32>
    %89 = arith.truncf %88 : vector<8x32xf32> to vector<8x32xbf16>
    %c0_36 = arith.constant 0 : index
    %c0_37 = arith.constant 0 : index
    %90 = vector.load %arg9[%c0_36, %c0_37] : memref<32x64xbf16, #tpu.memory_space<vmem>>, vector<32x64xbf16>
    %cst_38 = arith.constant dense<0.000000e+00> : vector<8x64xf32>
    %91 = tpu.matmul %89, %90, %cst_38 {dimension_numbers = #tpu.dot_dimension_numbers<[1], [0], [0], [1], [0, 0, 1, 1], [], []>} : vector<8x32xbf16>, vector<32x64xbf16>, vector<8x64xf32> -> vector<8x64xf32>
    %c0_39 = arith.constant 0 : index
    %c0_40 = arith.constant 0 : index
    %92 = vector.load %arg10[%c0_39, %c0_40] : memref<1x64xbf16, #tpu.memory_space<vmem>>, vector<1x64xbf16>
    %93 = arith.extf %92 : vector<1x64xbf16> to vector<1x64xf32>
    %94 = vector.broadcast %93 : vector<1x64xf32> to vector<8x64xf32>
    %95 = arith.addf %91, %94 : vector<8x64xf32>
    %cst_41 = arith.constant 5.000000e-01 : f32
    %96 = vector.broadcast %cst_41 : f32 to vector<8x64xf32>
    %97 = arith.mulf %96, %95 : vector<8x64xf32>
    %cst_42 = arith.constant 4.471500e-02 : f32
    %98 = vector.broadcast %cst_42 : f32 to vector<8x64xf32>
    %99 = arith.mulf %98, %95 : vector<8x64xf32>
    %100 = arith.mulf %99, %95 : vector<8x64xf32>
    %101 = arith.mulf %100, %95 : vector<8x64xf32>
    %102 = arith.addf %95, %101 : vector<8x64xf32>
    %cst_43 = arith.constant 0.797884583 : f32
    %103 = vector.broadcast %cst_43 : f32 to vector<8x64xf32>
    %104 = arith.mulf %103, %102 : vector<8x64xf32>
    %105 = math.tanh %104 : vector<8x64xf32>
    %cst_44 = arith.constant 1.000000e+00 : f32
    %106 = vector.broadcast %cst_44 : f32 to vector<8x64xf32>
    %107 = arith.addf %106, %105 : vector<8x64xf32>
    %108 = arith.mulf %97, %107 : vector<8x64xf32>
    %109 = arith.truncf %108 : vector<8x64xf32> to vector<8x64xbf16>
    %c0_45 = arith.constant 0 : index
    %c0_46 = arith.constant 0 : index
    %110 = vector.load %arg11[%c0_45, %c0_46] : memref<64x32xbf16, #tpu.memory_space<vmem>>, vector<64x32xbf16>
    %cst_47 = arith.constant dense<0.000000e+00> : vector<8x32xf32>
    %111 = tpu.matmul %109, %110, %cst_47 {dimension_numbers = #tpu.dot_dimension_numbers<[1], [0], [0], [1], [0, 0, 1, 1], [], []>} : vector<8x64xbf16>, vector<64x32xbf16>, vector<8x32xf32> -> vector<8x32xf32>
    %c0_48 = arith.constant 0 : index
    %c0_49 = arith.constant 0 : index
    %112 = vector.load %arg12[%c0_48, %c0_49] : memref<1x32xbf16, #tpu.memory_space<vmem>>, vector<1x32xbf16>
    %113 = arith.extf %112 : vector<1x32xbf16> to vector<1x32xf32>
    %114 = vector.broadcast %113 : vector<1x32xf32> to vector<8x32xf32>
    %115 = arith.addf %111, %114 : vector<8x32xf32>
    %116 = arith.addf %115, %88 : vector<8x32xf32>
    %c0_50 = arith.constant 0 : index
    %c0_51 = arith.constant 0 : index
    %117 = vector.load %arg13[%c0_50, %c0_51] : memref<1x32xbf16, #tpu.memory_space<vmem>>, vector<1x32xbf16>
    %c0_52 = arith.constant 0 : index
    %c0_53 = arith.constant 0 : index
    %118 = vector.load %arg14[%c0_52, %c0_53] : memref<1x32xbf16, #tpu.memory_space<vmem>>, vector<1x32xbf16>
    %119 = arith.extf %117 : vector<1x32xbf16> to vector<1x32xf32>
    %120 = arith.extf %118 : vector<1x32xbf16> to vector<1x32xf32>
    %cst_54 = arith.constant dense<0.000000e+00> : vector<8xf32>
    %121 = vector.multi_reduction <add>, %116, %cst_54 [1] : vector<8x32xf32> to vector<8xf32>
    %122 = vector.shape_cast %121 : vector<8xf32> to vector<8x1xf32>
    %cst_55 = arith.constant 3.200000e+01 : f32
    %123 = vector.broadcast %cst_55 : f32 to vector<8x1xf32>
    %124 = arith.divf %122, %123 : vector<8x1xf32>
    %125 = vector.broadcast %124 : vector<8x1xf32> to vector<8x32xf32>
    %126 = arith.subf %116, %125 : vector<8x32xf32>
    %127 = arith.mulf %126, %126 : vector<8x32xf32>
    %cst_56 = arith.constant dense<0.000000e+00> : vector<8xf32>
    %128 = vector.multi_reduction <add>, %127, %cst_56 [1] : vector<8x32xf32> to vector<8xf32>
    %129 = vector.shape_cast %128 : vector<8xf32> to vector<8x1xf32>
    %cst_57 = arith.constant 3.200000e+01 : f32
    %130 = vector.broadcast %cst_57 : f32 to vector<8x1xf32>
    %131 = arith.divf %129, %130 : vector<8x1xf32>
    %132 = vector.broadcast %124 : vector<8x1xf32> to vector<8x32xf32>
    %133 = arith.subf %116, %132 : vector<8x32xf32>
    %cst_58 = arith.constant 9.99999996E-13 : f32
    %134 = vector.broadcast %cst_58 : f32 to vector<8x1xf32>
    %135 = arith.addf %131, %134 : vector<8x1xf32>
    %136 = math.rsqrt %135 : vector<8x1xf32>
    %137 = vector.broadcast %136 : vector<8x1xf32> to vector<8x32xf32>
    %138 = arith.mulf %133, %137 : vector<8x32xf32>
    %139 = vector.broadcast %119 : vector<1x32xf32> to vector<8x32xf32>
    %140 = arith.mulf %138, %139 : vector<8x32xf32>
    %141 = vector.broadcast %120 : vector<1x32xf32> to vector<8x32xf32>
    %142 = arith.addf %140, %141 : vector<8x32xf32>
    %143 = arith.truncf %142 : vector<8x32xf32> to vector<8x32xbf16>
    %c0_59 = arith.constant 0 : index
    %c0_60 = arith.constant 0 : index
    %c0_61 = arith.constant 0 : index
    %144 = vector.load %arg15[%c0_59, %c0_60, %c0_61] : memref<1x8x32xbf16, #tpu.memory_space<vmem>>, vector<1x8x32xbf16>
    %145 = vector.shape_cast %144 : vector<1x8x32xbf16> to vector<8x32xbf16>
    %146 = vector.shape_cast %143 : vector<8x32xbf16> to vector<1x8x32xbf16>
    tpu.vector_store %arg15[%c0_59, %c0_60, %c0_61], %146 {strides = array<i32>} : memref<1x8x32xbf16, #tpu.memory_space<vmem>>, vector<1x8x32xbf16>,
    return
  }
  func.func @transform_0(%arg0: i32) -> (i32, i32, i32) {
    %c0_i32 = arith.constant 0 : i32
    %c0_i32_0 = arith.constant 0 : i32
    %c0_i32_1 = arith.constant 0 : i32
    return %arg0, %c0_i32, %c0_i32_0 : i32, i32, i32
  }
  func.func @transform_1(%arg0: i32) -> (i32, i32, i32) {
    %c0_i32 = arith.constant 0 : i32
    %c0_i32_0 = arith.constant 0 : i32
    %c0_i32_1 = arith.constant 0 : i32
    return %arg0, %c0_i32, %c0_i32_0 : i32, i32, i32
  }
  func.func @transform_2(%arg0: i32) -> (i32, i32) {
    %c0_i32 = arith.constant 0 : i32
    %c0_i32_0 = arith.constant 0 : i32
    %c0_i32_1 = arith.constant 0 : i32
    return %c0_i32, %c0_i32_0 : i32, i32
  }
  func.func @transform_3(%arg0: i32) -> (i32, i32) {
    %c0_i32 = arith.constant 0 : i32
    %c0_i32_0 = arith.constant 0 : i32
    %c0_i32_1 = arith.constant 0 : i32
    return %c0_i32, %c0_i32_0 : i32, i32
  }
  func.func @transform_4(%arg0: i32) -> (i32, i32) {
    %c0_i32 = arith.constant 0 : i32
    %c0_i32_0 = arith.constant 0 : i32
    %c0_i32_1 = arith.constant 0 : i32
    return %c0_i32, %c0_i32_0 : i32, i32
  }
  func.func @transform_5(%arg0: i32) -> (i32, i32) {
    %c0_i32 = arith.constant 0 : i32
    %c0_i32_0 = arith.constant 0 : i32
    %c0_i32_1 = arith.constant 0 : i32
    return %c0_i32, %c0_i32_0 : i32, i32
  }
  func.func @transform_6(%arg0: i32) -> (i32, i32) {
    %c0_i32 = arith.constant 0 : i32
    %c0_i32_0 = arith.constant 0 : i32
    %c0_i32_1 = arith.constant 0 : i32
    return %c0_i32, %c0_i32_0 : i32, i32
  }
  func.func @transform_7(%arg0: i32) -> (i32, i32) {
    %c0_i32 = arith.constant 0 : i32
    %c0_i32_0 = arith.constant 0 : i32
    %c0_i32_1 = arith.constant 0 : i32
    return %c0_i32, %c0_i32_0 : i32, i32
  }
  func.func @transform_8(%arg0: i32) -> (i32, i32) {
    %c0_i32 = arith.constant 0 : i32
    %c0_i32_0 = arith.constant 0 : i32
    %c0_i32_1 = arith.constant 0 : i32
    return %c0_i32, %c0_i32_0 : i32, i32
  }
  func.func @transform_9(%arg0: i32) -> (i32, i32) {
    %c0_i32 = arith.constant 0 : i32
    %c0_i32_0 = arith.constant 0 : i32
    %c0_i32_1 = arith.constant 0 : i32
    return %c0_i32, %c0_i32_0 : i32, i32
  }
  func.func @transform_10(%arg0: i32) -> (i32, i32) {
    %c0_i32 = arith.constant 0 : i32
    %c0_i32_0 = arith.constant 0 : i32
    %c0_i32_1 = arith.constant 0 : i32
    return %c0_i32, %c0_i32_0 : i32, i32
  }
  func.func @transform_11(%arg0: i32) -> (i32, i32) {
    %c0_i32 = arith.constant 0 : i32
    %c0_i32_0 = arith.constant 0 : i32
    %c0_i32_1 = arith.constant 0 : i32
    return %c0_i32, %c0_i32_0 : i32, i32
  }
  func.func @transform_12(%arg0: i32) -> (i32, i32) {
    %c0_i32 = arith.constant 0 : i32
    %c0_i32_0 = arith.constant 0 : i32
    %c0_i32_1 = arith.constant 0 : i32
    return %c0_i32, %c0_i32_0 : i32, i32
  }
  func.func @transform_13(%arg0: i32) -> (i32, i32) {
    %c0_i32 = arith.constant 0 : i32
    %c0_i32_0 = arith.constant 0 : i32
    %c0_i32_1 = arith.constant 0 : i32
    return %c0_i32, %c0_i32_0 : i32, i32
  }
  func.func @transform_14(%arg0: i32) -> (i32, i32, i32) {
    %c0_i32 = arith.constant 0 : i32
    %c0_i32_0 = arith.constant 0 : i32
    %c0_i32_1 = arith.constant 0 : i32
    return %arg0, %c0_i32, %c0_i32_0 : i32, i32, i32
  }
}

</mosaic_0001>

<llo_original>
// kernel: bert_forward.4
$region0: #{bert_forward.4}
  #allocation0 [shape = 'u32[]', space=smem, size = 0x4, offset = 0x4, fixed_abs, tag = 'smem constant byte address 0x4 - core index']
  #allocation1 [shape = 'u32[144,128]{1,0:T(1,128)}', space=vmem, size = 0x12000, scoped, tag = 'internal scratch']
  %s0 = inlined_call_operand.vmem [shape: f32[2,8,32], index: 0, kind: input, shape index: {}]
  %s1 = inlined_call_operand.vmem [shape: bf16[1,32], index: 1, kind: input, shape index: {}]
  %s2 = inlined_call_operand.vmem [shape: bf16[1,32], index: 2, kind: input, shape index: {}]
  %s3 = inlined_call_operand.vmem [shape: bf16[2,8,32], index: 3, kind: output, shape index: {}]
  %s4 = sld [smem:[#allocation0]]
  $region45: #{bert_forward.4} parent=0
    _
  %s6 = ssub.s32 1, %s4
  %s7 = scalar_select 0, %s6, %s4
  loop: start=0, step=1, limit=4
  $region2: #{bert_forward.4} parent=0 // loop_pre_header
    _
  $region3: #{bert_forward.4} parent=0 // loop_header
    %s9 = sphi 0, %s13
    %p10 = scmp.ge.s32.totalorder %s9, 4
    %s19 = sphi 0, %s21
    %s22 = sphi 0, %s19
    %s23 = sphi 0, %s22
    %s39 = sphi 0, %s23
    %s43 = sphi 0, %s43
    %s45 = sphi 0, %s43
    %s46 = sphi 0, %s45
    %s60 = sphi 0, %s46
    %s64 = sphi 0, %s64
    %s66 = sphi 0, %s64
    %s67 = sphi 0, %s66
    %s81 = sphi 0, %s67
    %s87 = sphi 0, %s89
    %s90 = sphi 0, %s87
    %s91 = sphi 0, %s90
    %s107 = sphi 0, %s91
  $region4: #{bert_forward.4} parent=0 // loop_header_branch
    %12 = sbr.rel (%p10) target = $region8
  $region5: #{bert_forward.4} parent=0 // loop_body
    %s14 = ssub.s32 %s9, 1
    %s15 = ssub.s32 %s9, 2
    %s16 = sadd.s32 %s9, 1
    %s17 = ssub.s32 %s9, %s16
    %p18 = scmp.eq.s32.totalorder %s17, 0
    %s20 = sadd.s32 %s19, 1
    %s21 = scalar_select %p18, %s19, %s20
    %p24 = pneg %p18
    %p25 = scmp.eq.s32.totalorder %s9, 1
    %p26 = por %p24, %p25
    %p27 = scmp.ne.s32.totalorder %s19, %s22
    %p28 = scmp.eq.s32.totalorder %s9, 0
    %p29 = por %p27, %p28
    %p30 = scmp.ne.s32.totalorder %s19, %s22
    %p31 = scmp.eq.s32.totalorder %s14, 1
    %p32 = por %p30, %p31
    %p33 = scmp.ne.s32.totalorder %s22, %s23
    %p34 = scmp.eq.s32.totalorder %s14, 0
    %p35 = por %p33, %p34
    %p36 = scmp.ne.s32.totalorder %s22, %s23
    %p37 = scmp.eq.s32.totalorder %s15, 1
    %p38 = por %p36, %p37
    %p40 = scmp.ne.s32.totalorder %s23, %s39
    %p41 = scmp.eq.s32.totalorder %s15, 0
    %p42 = por %p40, %p41
    %s44 = sadd.s32 %s43, 1
    %p47 = scmp.eq.s32.totalorder %s9, 1
    %p48 = scmp.ne.s32.totalorder %s43, %s45
    %p49 = scmp.eq.s32.totalorder %s9, 0
    %p50 = por %p48, %p49
    %p51 = scmp.ne.s32.totalorder %s43, %s45
    %p52 = scmp.eq.s32.totalorder %s14, 1
    %p53 = por %p51, %p52
    %p54 = scmp.ne.s32.totalorder %s45, %s46
    %p55 = scmp.eq.s32.totalorder %s14, 0
    %p56 = por %p54, %p55
    %p57 = scmp.ne.s32.totalorder %s45, %s46
    %p58 = scmp.eq.s32.totalorder %s15, 1
    %p59 = por %p57, %p58
    %p61 = scmp.ne.s32.totalorder %s46, %s60
    %p62 = scmp.eq.s32.totalorder %s15, 0
    %p63 = por %p61, %p62
    %s65 = sadd.s32 %s64, 1
    %p68 = scmp.eq.s32.totalorder %s9, 1
    %p69 = scmp.ne.s32.totalorder %s64, %s66
    %p70 = scmp.eq.s32.totalorder %s9, 0
    %p71 = por %p69, %p70
    %p72 = scmp.ne.s32.totalorder %s64, %s66
    %p73 = scmp.eq.s32.totalorder %s14, 1
    %p74 = por %p72, %p73
    %p75 = scmp.ne.s32.totalorder %s66, %s67
    %p76 = scmp.eq.s32.totalorder %s14, 0
    %p77 = por %p75, %p76
    %p78 = scmp.ne.s32.totalorder %s66, %s67
    %p79 = scmp.eq.s32.totalorder %s15, 1
    %p80 = por %p78, %p79
    %p82 = scmp.ne.s32.totalorder %s67, %s81
    %p83 = scmp.eq.s32.totalorder %s15, 0
    %p84 = por %p82, %p83
    %s85 = ssub.s32 %s9, %s16
    %p86 = scmp.eq.s32.totalorder %s85, 0
    %s88 = sadd.s32 %s87, 1
    %s89 = scalar_select %p86, %s87, %s88
    %p92 = pneg %p86
    %p93 = scmp.eq.s32.totalorder %s9, 1
    %p94 = por %p92, %p93
    %p95 = scmp.ne.s32.totalorder %s87, %s90
    %p96 = scmp.eq.s32.totalorder %s9, 0
    %p97 = por %p95, %p96
    %p98 = scmp.ne.s32.totalorder %s87, %s90
    %p99 = scmp.eq.s32.totalorder %s14, 1
    %p100 = por %p98, %p99
    %p101 = scmp.ne.s32.totalorder %s90, %s91
    %p102 = scmp.eq.s32.totalorder %s14, 0
    %p103 = por %p101, %p102
    %p104 = scmp.ne.s32.totalorder %s90, %s91
    %p105 = scmp.eq.s32.totalorder %s15, 1
    %p106 = por %p104, %p105
    %p108 = scmp.ne.s32.totalorder %s91, %s107
    %p109 = scmp.eq.s32.totalorder %s15, 0
    %p110 = por %p108, %p109
    %p111 = scmp.le.s32.totalorder 1, %s9
    %p112 = scmp.lt.s32.totalorder %s9, 3
    %p113 = pnand %p111, %p112
    %p114 = pneg %p113
    // Predicated region
    $region9: #{bert_forward.4} parent=5 // pred_check
      _
    $region10: #{bert_forward.4} parent=5 // pred_check_branch
      %116 = sbr.rel (%p113) target = $region12
    $region11: #{bert_forward.4} parent=5 // pred_region
      %s117 = ssub.s32 %s9, 1
      // Predicated region
      $region13: #{bert_forward.4} parent=11 // pred_check
        %p118 = pneg %p56
      $region14: #{bert_forward.4} parent=11 // pred_check_branch
        %120 = sbr.rel (%p118) target = $region16
      $region15: #{bert_forward.4} parent=11 // pred_region
        _
      $region16: #{bert_forward.4} parent=11 // pred_fallthru
        _
      // Predicated region
      $region17: #{bert_forward.4} parent=11 // pred_check
        %p121 = pneg %p77
      $region18: #{bert_forward.4} parent=11 // pred_check_branch
        %123 = sbr.rel (%p121) target = $region20
      $region19: #{bert_forward.4} parent=11 // pred_region
        _
      $region20: #{bert_forward.4} parent=11 // pred_fallthru
        _
    $region12: #{bert_forward.4} parent=5 // pred_fallthru
      _
    %p124 = scmp.lt.s32.totalorder %s9, 2
    // Predicated region
    $region21: #{bert_forward.4} parent=5 // pred_check
      %p125 = pneg %p124
    $region22: #{bert_forward.4} parent=5 // pred_check_branch
      %127 = sbr.rel (%p125) target = $region24
    $region23: #{bert_forward.4} parent=5 // pred_region
      // Predicated region
      $region25: #{bert_forward.4} parent=23 // pred_check
        %p128 = pneg %p29
      $region26: #{bert_forward.4} parent=23 // pred_check_branch
        %130 = sbr.rel (%p128) target = $region28
      $region27: #{bert_forward.4} parent=23 // pred_region
        %p131 = scmp.lt.s32.totalorder %s9, 1
        %s132 = scalar_select %p131, %s9, 1
        %s133 = smul.addr %s132, 8
        %s134 = scalar_lea.vmem %s0, %s133
      $region28: #{bert_forward.4} parent=23 // pred_fallthru
        _
    $region24: #{bert_forward.4} parent=5 // pred_fallthru
      _
    %p135 = scmp.le.s32.totalorder 1, %s9
    %p136 = scmp.lt.s32.totalorder %s9, 3
    %p137 = pnand %p135, %p136
    %p138 = pneg %p137
    // Predicated region
    $region29: #{bert_forward.4} parent=5 // pred_check
      _
    $region30: #{bert_forward.4} parent=5 // pred_check_branch
      %140 = sbr.rel (%p137) target = $region32
    $region31: #{bert_forward.4} parent=5 // pred_region
      %s141 = ssub.s32 %s9, 1
      %p142 = scmp.lt.s32.totalorder %s14, 1
      %s143 = scalar_select %p142, %s14, 1
      %s144 = smul.addr %s143, 8
      %s145 = scalar_lea.vmem %s0, %s144
      %p146 = pneg %p35
      %p147 = pneg %p32
      %p148 = pneg %p56
      %p149 = pneg %p53
      %p150 = pneg %p77
      %p151 = pneg %p74
      %p152 = pneg %p103
      %p153 = pneg %p100
      %p154 = scmp.lt.s32.totalorder %s14, 1
      %s155 = scalar_select %p154, %s14, 1
      %s156 = smul.addr %s155, 4
      %s157 = scalar_lea.vmem %s3, %s156
      %p158 = scmp.lt.s32.totalorder %s14, 1
      %s159 = scalar_select %p158, %s14, 1
      %s160 = smul.addr %s159, 8
      %s161 = scalar_lea.vmem %s0, %s160
      %p162 = scmp.lt.s32.totalorder %s14, 1
      %s163 = scalar_select %p162, %s14, 1
      %s164 = smul.addr %s163, 4
      %s165 = scalar_lea.vmem %s3, %s164
      %v166 = vld [vmem:[%s161] sm:$0xff]
      %v167 = vld [vmem:[%s1] sm:$0x1]
      %v168 = vld [vmem:[%s2] sm:$0x1]
      %v169 = vunpack.c.l.bf16 %v167
      %v170 = vunpack.c.l.bf16 %v168
      %vm171 = vcmask 261120
      %v172 = vsel %vm171, %v166, 0.0
      %173 = vadd.xlane.f32.xlu0 %v172
      %v174 = vpop.xlane.xlu0 %173
      %v175 = vrcp.pop 32.0
      %v176 = vmul.f32 %v174, %v175
      %v177 = vsub.f32 %v166, %v176
      %v178 = vmul.f32 %v177, %v177
      %v179 = vsel %vm171, %v178, 0.0
      %180 = vadd.xlane.f32.xlu0 %v179
      %v181 = vpop.xlane.xlu0 %180
      %v182 = vmul.f32 %v181, %v175
      %v183 = vadd.f32 %v182, 1e-12
      %v184 = vrsqrt.pop %v183
      %v185 = vmul.f32 %v177, %v184
      %v186 = vlaneseq
      %v187 = vshrl.u32 %v186, 7
      %v188 = vsub.s32 0, %v187
      %v189 = vrot.slane %v169, %v188
      %v190 = vmul.f32 %v185, %v189
      %v191 = vlaneseq
      %v192 = vshrl.u32 %v191, 7
      %v193 = vsub.s32 0, %v192
      %v194 = vrot.slane %v170, %v193
      %v195 = vadd.f32 %v190, %v194
      %v196 = vpack.c.bf16 %v195, %v195
      %vm197 = vcmask 257024
      %198 = vst.msk [vmem:[%s165] sm:$0xf] %vm197, %v196
      %p199 = scmp.lt.s32.totalorder %s14, 1
      %s200 = scalar_select %p199, %s14, 1
      %s201 = smul.addr %s200, 4
      %s202 = scalar_lea.vmem %s3, %s201
      // Predicated region
      $region33: #{bert_forward.4} parent=31 // pred_check
        %p203 = pneg %p100
      $region34: #{bert_forward.4} parent=31 // pred_check_branch
        %205 = sbr.rel (%p203) target = $region36
      $region35: #{bert_forward.4} parent=31 // pred_region
        _
      $region36: #{bert_forward.4} parent=31 // pred_fallthru
        _
    $region32: #{bert_forward.4} parent=5 // pred_fallthru
      _
    %p206 = scmp.le.s32.totalorder 2, %s9
    // Predicated region
    $region37: #{bert_forward.4} parent=5 // pred_check
      %p207 = pneg %p206
    $region38: #{bert_forward.4} parent=5 // pred_check_branch
      %209 = sbr.rel (%p207) target = $region40
    $region39: #{bert_forward.4} parent=5 // pred_region
      %s210 = ssub.s32 %s9, 2
      // Predicated region
      $region41: #{bert_forward.4} parent=39 // pred_check
        %p211 = pneg %p106
      $region42: #{bert_forward.4} parent=39 // pred_check_branch
        %213 = sbr.rel (%p211) target = $region44
      $region43: #{bert_forward.4} parent=39 // pred_region
        %p214 = scmp.lt.s32.totalorder %s15, 1
        %s215 = scalar_select %p214, %s15, 1
        %s216 = smul.addr %s215, 4
        %s217 = scalar_lea.vmem %s3, %s216
      $region44: #{bert_forward.4} parent=39 // pred_fallthru
        _
    $region40: #{bert_forward.4} parent=5 // pred_fallthru
      _
  $region6: #{bert_forward.4} parent=0 // loop_footer
    %s13 = sadd.s32 1, %s9
  $region7: #{bert_forward.4} parent=0 // loop_footer_branch
    %8 = sbr.rel target = $region3
  $region8: #{bert_forward.4} parent=0 // loop_exit
    _

// kernel: bert_forward.7
$region0: #{bert_forward.7}
  #allocation0 [shape = 'u32[]', space=smem, size = 0x4, offset = 0x4, fixed_abs, tag = 'smem constant byte address 0x4 - core index']
  #allocation1 [shape = 'u32[144,128]{1,0:T(1,128)}', space=vmem, size = 0x12000, scoped, tag = 'internal scratch']
  %s0 = inlined_call_operand.vmem [shape: bf16[2,32], index: 0, kind: input, shape index: {}]
  %s1 = inlined_call_operand.vmem [shape: bf16[32,32], index: 1, kind: input, shape index: {}]
  %s2 = inlined_call_operand.vmem [shape: bf16[1,32], index: 2, kind: input, shape index: {}]
  %s3 = inlined_call_operand.vmem [shape: bf16[32,7], index: 3, kind: input, shape index: {}]
  %s4 = inlined_call_operand.vmem [shape: f32[1,7], index: 4, kind: input, shape index: {}]
  %s5 = inlined_call_operand.hbm [shape: f32[2,7], index: 5, kind: output, shape index: {0}]
  %s6 = inlined_call_operand.vmem [shape: s32[2,1], index: 6, kind: output, shape index: {1}]
  %7 = xla_tuple %s5, %s6
  %s8 = sld [smem:[#allocation0]]
  $region38: #{bert_forward.7} parent=0
    _
  %s10 = ssub.s32 1, %s8
  %s11 = scalar_select 0, %s10, %s8
  $region1: #{bert_forward.7} parent=0
    #allocation2 [shape = 'u8[1024]{0}', space=vmem, size = 0x400, scoped, tag = 'output window, operand 0, single buffered']
    #allocation3 [shape = 's32[1]{0}', space=sflag, size = 0x4, scoped, tag = 'scoped memory for bert_forward.7']
    %12 = vsyncpa [#allocation3], 0
    // Predicated region
    $region2: #{bert_forward.7} parent=1 // pred_check
      _
    $region3: #{bert_forward.7} parent=1 // pred_check_branch
      %14 = sbr.rel (0) target = $region5
    $region4: #{bert_forward.7} parent=1 // pred_region
      _
    $region5: #{bert_forward.7} parent=1 // pred_fallthru
      _
    // Predicated region
    $region6: #{bert_forward.7} parent=1 // pred_check
      _
    $region7: #{bert_forward.7} parent=1 // pred_check_branch
      %16 = sbr.rel (0) target = $region9
    $region8: #{bert_forward.7} parent=1 // pred_region
      _
    $region9: #{bert_forward.7} parent=1 // pred_fallthru
      _
    // Predicated region
    $region10: #{bert_forward.7} parent=1 // pred_check
      _
    $region11: #{bert_forward.7} parent=1 // pred_check_branch
      %18 = sbr.rel (0) target = $region13
    $region12: #{bert_forward.7} parent=1 // pred_region
      _
    $region13: #{bert_forward.7} parent=1 // pred_fallthru
      _
    // Predicated region
    $region14: #{bert_forward.7} parent=1 // pred_check
      _
    $region15: #{bert_forward.7} parent=1 // pred_check_branch
      %20 = sbr.rel (0) target = $region17
    $region16: #{bert_forward.7} parent=1 // pred_region
      _
    $region17: #{bert_forward.7} parent=1 // pred_fallthru
      _
    // Predicated region
    $region18: #{bert_forward.7} parent=1 // pred_check
      _
    $region19: #{bert_forward.7} parent=1 // pred_check_branch
      %22 = sbr.rel (0) target = $region21
    $region20: #{bert_forward.7} parent=1 // pred_region
      _
    $region21: #{bert_forward.7} parent=1 // pred_fallthru
      _
    %v24 = vld [vmem:[%s0] sm:$0x1]
    %v25 = vld [vmem:[%s1] sm:$0xf]
    %v26 = vld [vmem:[%s1 + $0x4] sm:$0xf]
    %v27 = vld [vmem:[%s1 + $0x8] sm:$0xf]
    %v28 = vld [vmem:[%s1 + $0xc] sm:$0xf]
    %v29 = vld [vmem:[%s2] sm:$0x1]
    %v30 = vunpack.c.l.bf16 %v29
    %v31 = vlaneseq
    %v32 = vshrl.u32 %v31, 7
    %v33 = vsub.s32 0, %v32
    %v34 = vrot.slane %v30, %v33
    %v39 = vunpack.c.l.b16 %v25
    %v40 = vunpack.c.l.b16 %v26
    %v41 = vunpack.c.l.b16 %v27
    %v42 = vunpack.c.l.b16 %v28
    %v43 = vpack.c.b16 %v40, %v39
    %v44 = vpack.c.b16 %v42, %v41
    %vm47 = vcmask 261120
    %v49 = vsel %vm47, %v24, 0
    %51 = vmatprep.subr.bf16.mxu0 0
    %52 = vmatpush1.bf16.msra.mxu0 %v43
    %53 = vmatprep.subr.bf16.mxu0 0
    %54 = vmatpush1.bf16.msra.mxu0 %v44
    %55 = vmatprep.subr.bf16.mxu0 0
    %56 = vmatpush1.bf16.msra.mxu0 0
    %57 = vmatprep.subr.bf16.mxu0 0
    %58 = vmatpush1.bf16.msra.mxu0 0
    %59 = vmatprep.subr.bf16.mxu0 0
    %60 = vmatpush1.bf16.msra.mxu0 0
    %61 = vmatprep.subr.bf16.mxu0 0
    %62 = vmatpush1.bf16.msra.mxu0 0
    %63 = vmatprep.subr.bf16.mxu0 0
    %64 = vmatpush1.bf16.msra.mxu0 0
    %65 = vmatprep.subr.bf16.mxu0 0
    %66 = vmatpush1.bf16.msra.mxu0 0
    %67 = vmatprep.subr.bf16.mxu0 0
    %68 = vmatpush1.bf16.msra.mxu0 0
    %69 = vmatprep.subr.bf16.mxu0 0
    %70 = vmatpush1.bf16.msra.mxu0 0
    %71 = vmatprep.subr.bf16.mxu0 0
    %72 = vmatpush1.bf16.msra.mxu0 0
    %73 = vmatprep.subr.bf16.mxu0 0
    %74 = vmatpush1.bf16.msra.mxu0 0
    %75 = vmatprep.subr.bf16.mxu0 0
    %76 = vmatpush1.bf16.msra.mxu0 0
    %77 = vmatprep.subr.bf16.mxu0 0
    %78 = vmatpush1.bf16.msra.mxu0 0
    %79 = vmatprep.subr.bf16.mxu0 0
    %80 = vmatpush1.bf16.msra.mxu0 0
    %81 = vmatprep.subr.bf16.mxu0 0
    %82 = vmatpush1.bf16.msra.mxu0 0
    %83 = vmatprep.mubr.bf16.mxu0 0
    %84 = vmatmul.mubr.bf16.gmra.mrb[0].mxu0 %v49
    %v85 = vpop.f32.mrb[0].mxu0
    %v86 = vadd.f32 %v34, %v85
    %v87 = vpop.f32.mrb[0].mxu0
    %v88 = vpop.f32.mrb[0].mxu0
    %v89 = vpop.f32.mrb[0].mxu0
    %90 = vdwg.mxu0
    %v91 = vtanh.pop %v86
    %v92 = vpack.c.bf16 %v91, %v91
    %v93 = vld [vmem:[%s3] sm:$0xf]
    %v94 = vld [vmem:[%s3 + $0x4] sm:$0xf]
    %v95 = vld [vmem:[%s3 + $0x8] sm:$0xf]
    %v96 = vld [vmem:[%s3 + $0xc] sm:$0xf]
    %v97 = vld [vmem:[%s4] sm:$0x1]
    %v99 = vlaneseq
    %v100 = vshrl.u32 %v99, 7
    %v101 = vsub.s32 0, %v100
    %v102 = vrot.slane %v97, %v101
    %v108 = vunpack.c.l.b16 %v93
    %v109 = vunpack.c.l.b16 %v94
    %v110 = vunpack.c.l.b16 %v95
    %v111 = vunpack.c.l.b16 %v96
    %v112 = vpack.c.b16 %v109, %v108
    %v113 = vpack.c.b16 %v111, %v110
    %v117 = vsel %vm47, %v92, 0
    %119 = vmatprep.subr.bf16.mxu0 0
    %120 = vmatpush1.bf16.msra.mxu0 %v112
    %121 = vmatprep.subr.bf16.mxu0 0
    %122 = vmatpush1.bf16.msra.mxu0 %v113
    %123 = vmatprep.subr.bf16.mxu0 0
    %124 = vmatpush1.bf16.msra.mxu0 0
    %125 = vmatprep.subr.bf16.mxu0 0
    %126 = vmatpush1.bf16.msra.mxu0 0
    %127 = vmatprep.subr.bf16.mxu0 0
    %128 = vmatpush1.bf16.msra.mxu0 0
    %129 = vmatprep.subr.bf16.mxu0 0
    %130 = vmatpush1.bf16.msra.mxu0 0
    %131 = vmatprep.subr.bf16.mxu0 0
    %132 = vmatpush1.bf16.msra.mxu0 0
    %133 = vmatprep.subr.bf16.mxu0 0
    %134 = vmatpush1.bf16.msra.mxu0 0
    %135 = vmatprep.subr.bf16.mxu0 0
    %136 = vmatpush1.bf16.msra.mxu0 0
    %137 = vmatprep.subr.bf16.mxu0 0
    %138 = vmatpush1.bf16.msra.mxu0 0
    %139 = vmatprep.subr.bf16.mxu0 0
    %140 = vmatpush1.bf16.msra.mxu0 0
    %141 = vmatprep.subr.bf16.mxu0 0
    %142 = vmatpush1.bf16.msra.mxu0 0
    %143 = vmatprep.subr.bf16.mxu0 0
    %144 = vmatpush1.bf16.msra.mxu0 0
    %145 = vmatprep.subr.bf16.mxu0 0
    %146 = vmatpush1.bf16.msra.mxu0 0
    %147 = vmatprep.subr.bf16.mxu0 0
    %148 = vmatpush1.bf16.msra.mxu0 0
    %149 = vmatprep.subr.bf16.mxu0 0
    %150 = vmatpush1.bf16.msra.mxu0 0
    %151 = vmatprep.mubr.bf16.mxu0 0
    %152 = vmatmul.mubr.bf16.gmra.mrb[0].mxu0 %v117
    %v153 = vpop.f32.mrb[0].mxu0
    %v154 = vadd.f32 %v102, %v153
    %v155 = vpop.f32.mrb[0].mxu0
    %v156 = vpop.f32.mrb[0].mxu0
    %v157 = vpop.f32.mrb[0].mxu0
    %158 = vdwg.mxu0
    %vm159 = vcmask 50176
    %160 = vst.msk [vmem:[#allocation2] sm:$0x3] %vm159, %v154
    %v161 = vlaneseq
    %v162 = vand.u32 %v161, 127
    %v163 = vsel %vm159, %v154, -inf
    %164 = vmax.xlane.f32.xlu0 %v163
    %v165 = vpop.xlane.xlu0 %164
    %vm166 = vcmp.eq.f32.partialorder %v154, %v165
    %v167 = vsel %vm166, %v162, 7
    %v168 = vsel %vm159, %v167, 2147483647
    %v169 = vand.u32 %v168, 65535
    %v170 = vshra.s32 %v168, 16
    %v171 = vcvt.s32.f32 %v169
    %v172 = vcvt.s32.f32 %v170
    %173 = vmin.xlane.f32.xlu0 %v172
    %v174 = vpop.xlane.xlu0 %173
    %vm175 = vcmp.eq.f32.partialorder %v172, %v174
    %v176 = vsel %vm175, %v171, inf
    %177 = vmin.xlane.f32.xlu0 %v176
    %v178 = vpop.xlane.xlu0 %177
    %v179 = vcvt.f32.s32 %v178
    %v180 = vcvt.f32.s32 %v174
    %v181 = vshll.u32 %v180, 16
    %v182 = vadd.s32 %v181, %v179
    %vm183 = vcmask 1024
    %184 = vst.msk [vmem:[%s6] sm:$0x3] %vm183, %v182
    // Predicated region
    $region22: #{bert_forward.7} parent=1 // pred_check
      _
    $region23: #{bert_forward.7} parent=1 // pred_check_branch
      %186 = sbr.rel (0) target = $region25
    $region24: #{bert_forward.7} parent=1 // pred_region
      %s188 = ssub.s32 32, 32
      %189 = vsyncadd [#allocation3], %s188
      %s191 = sshll.u32 [#allocation2], 4
      %s192 = int_to_ptr.vmem [resolvable:$true] %s191
      %194 = dma.vmem_to_hbm [thread:$0]  %s192, 32, %s5, [#allocation3]
    $region25: #{bert_forward.7} parent=1 // pred_fallthru
      _
    // Predicated region
    $region26: #{bert_forward.7} parent=1 // pred_check
      _
    $region27: #{bert_forward.7} parent=1 // pred_check_branch
      %196 = sbr.rel (0) target = $region29
    $region28: #{bert_forward.7} parent=1 // pred_region
      _
    $region29: #{bert_forward.7} parent=1 // pred_fallthru
      _
    // Predicated region
    $region30: #{bert_forward.7} parent=1 // pred_check
      _
    $region31: #{bert_forward.7} parent=1 // pred_check_branch
      %198 = sbr.rel (0) target = $region33
    $region32: #{bert_forward.7} parent=1 // pred_region
      %199 = dma.done [#allocation3], 32
    $region33: #{bert_forward.7} parent=1 // pred_fallthru
      _
    // Predicated region
    $region34: #{bert_forward.7} parent=1 // pred_check
      _
    $region35: #{bert_forward.7} parent=1 // pred_check_branch
      %201 = sbr.rel (0) target = $region37
    $region36: #{bert_forward.7} parent=1 // pred_region
      _
    $region37: #{bert_forward.7} parent=1 // pred_fallthru
      _
    %202 = vsyncpa [#allocation3], 1

// kernel: bert_forward.5
$region0: #{bert_forward.5}
  #allocation0 [shape = 'u32[]', space=smem, size = 0x4, offset = 0x4, fixed_abs, tag = 'smem constant byte address 0x4 - core index']
  #allocation1 [shape = 'u32[144,128]{1,0:T(1,128)}', space=vmem, size = 0x12000, scoped, tag = 'internal scratch']
  %s0 = inlined_call_operand.vmem [shape: bf16[2,8,32], index: 0, kind: input, shape index: {}]
  %s1 = inlined_call_operand.vmem [shape: f32[2,1,8], index: 1, kind: input, shape index: {}]
  %s2 = inlined_call_operand.vmem [shape: bf16[32,96], index: 2, kind: input, shape index: {}]
  %s3 = inlined_call_operand.vmem [shape: bf16[1,96], index: 3, kind: input, shape index: {}]
  %s4 = inlined_call_operand.vmem [shape: bf16[32,32], index: 4, kind: input, shape index: {}]
  %s5 = inlined_call_operand.vmem [shape: bf16[1,32], index: 5, kind: input, shape index: {}]
  %s6 = inlined_call_operand.vmem [shape: bf16[1,32], index: 6, kind: input, shape index: {}]
  %s7 = inlined_call_operand.vmem [shape: bf16[1,32], index: 7, kind: input, shape index: {}]
  %s8 = inlined_call_operand.vmem [shape: bf16[32,64], index: 8, kind: input, shape index: {}]
  %s9 = inlined_call_operand.vmem [shape: bf16[1,64], index: 9, kind: input, shape index: {}]
  %s10 = inlined_call_operand.vmem [shape: bf16[64,32], index: 10, kind: input, shape index: {}]
  %s11 = inlined_call_operand.vmem [shape: bf16[1,32], index: 11, kind: input, shape index: {}]
  %s12 = inlined_call_operand.vmem [shape: bf16[1,32], index: 12, kind: input, shape index: {}]
  %s13 = inlined_call_operand.vmem [shape: bf16[1,32], index: 13, kind: input, shape index: {}]
  %s14 = inlined_call_operand.vmem [shape: bf16[2,8,32], index: 14, kind: output, shape index: {}]
  %s15 = sld [smem:[#allocation0]]
  $region89: #{bert_forward.5} parent=0
    _
  %s17 = ssub.s32 1, %s15
  %s18 = scalar_select 0, %s17, %s15
  loop: start=0, step=1, limit=4
  $region2: #{bert_forward.5} parent=0 // loop_pre_header
    _
  $region3: #{bert_forward.5} parent=0 // loop_header
    %s20 = sphi 0, %s24
    %p21 = scmp.ge.s32.totalorder %s20, 4
    %s30 = sphi 0, %s32
    %s33 = sphi 0, %s30
    %s34 = sphi 0, %s33
    %s50 = sphi 0, %s34
    %s56 = sphi 0, %s58
    %s59 = sphi 0, %s56
    %s60 = sphi 0, %s59
    %s76 = sphi 0, %s60
    %s80 = sphi 0, %s80
    %s82 = sphi 0, %s80
    %s83 = sphi 0, %s82
    %s97 = sphi 0, %s83
    %s101 = sphi 0, %s101
    %s103 = sphi 0, %s101
    %s104 = sphi 0, %s103
    %s118 = sphi 0, %s104
    %s122 = sphi 0, %s122
    %s124 = sphi 0, %s122
    %s125 = sphi 0, %s124
    %s139 = sphi 0, %s125
    %s143 = sphi 0, %s143
    %s145 = sphi 0, %s143
    %s146 = sphi 0, %s145
    %s160 = sphi 0, %s146
    %s164 = sphi 0, %s164
    %s166 = sphi 0, %s164
    %s167 = sphi 0, %s166
    %s181 = sphi 0, %s167
    %s185 = sphi 0, %s185
    %s187 = sphi 0, %s185
    %s188 = sphi 0, %s187
    %s202 = sphi 0, %s188
    %s206 = sphi 0, %s206
    %s208 = sphi 0, %s206
    %s209 = sphi 0, %s208
    %s223 = sphi 0, %s209
    %s227 = sphi 0, %s227
    %s229 = sphi 0, %s227
    %s230 = sphi 0, %s229
    %s244 = sphi 0, %s230
    %s248 = sphi 0, %s248
    %s250 = sphi 0, %s248
    %s251 = sphi 0, %s250
    %s265 = sphi 0, %s251
    %s269 = sphi 0, %s269
    %s271 = sphi 0, %s269
    %s272 = sphi 0, %s271
    %s286 = sphi 0, %s272
    %s290 = sphi 0, %s290
    %s292 = sphi 0, %s290
    %s293 = sphi 0, %s292
    %s307 = sphi 0, %s293
    %s311 = sphi 0, %s311
    %s313 = sphi 0, %s311
    %s314 = sphi 0, %s313
    %s328 = sphi 0, %s314
    %s334 = sphi 0, %s336
    %s337 = sphi 0, %s334
    %s338 = sphi 0, %s337
    %s354 = sphi 0, %s338
  $region4: #{bert_forward.5} parent=0 // loop_header_branch
    %23 = sbr.rel (%p21) target = $region8
  $region5: #{bert_forward.5} parent=0 // loop_body
    %s25 = ssub.s32 %s20, 1
    %s26 = ssub.s32 %s20, 2
    %s27 = sadd.s32 %s20, 1
    %s28 = ssub.s32 %s20, %s27
    %p29 = scmp.eq.s32.totalorder %s28, 0
    %s31 = sadd.s32 %s30, 1
    %s32 = scalar_select %p29, %s30, %s31
    %p35 = pneg %p29
    %p36 = scmp.eq.s32.totalorder %s20, 1
    %p37 = por %p35, %p36
    %p38 = scmp.ne.s32.totalorder %s30, %s33
    %p39 = scmp.eq.s32.totalorder %s20, 0
    %p40 = por %p38, %p39
    %p41 = scmp.ne.s32.totalorder %s30, %s33
    %p42 = scmp.eq.s32.totalorder %s25, 1
    %p43 = por %p41, %p42
    %p44 = scmp.ne.s32.totalorder %s33, %s34
    %p45 = scmp.eq.s32.totalorder %s25, 0
    %p46 = por %p44, %p45
    %p47 = scmp.ne.s32.totalorder %s33, %s34
    %p48 = scmp.eq.s32.totalorder %s26, 1
    %p49 = por %p47, %p48
    %p51 = scmp.ne.s32.totalorder %s34, %s50
    %p52 = scmp.eq.s32.totalorder %s26, 0
    %p53 = por %p51, %p52
    %s54 = ssub.s32 %s20, %s27
    %p55 = scmp.eq.s32.totalorder %s54, 0
    %s57 = sadd.s32 %s56, 1
    %s58 = scalar_select %p55, %s56, %s57
    %p61 = pneg %p55
    %p62 = scmp.eq.s32.totalorder %s20, 1
    %p63 = por %p61, %p62
    %p64 = scmp.ne.s32.totalorder %s56, %s59
    %p65 = scmp.eq.s32.totalorder %s20, 0
    %p66 = por %p64, %p65
    %p67 = scmp.ne.s32.totalorder %s56, %s59
    %p68 = scmp.eq.s32.totalorder %s25, 1
    %p69 = por %p67, %p68
    %p70 = scmp.ne.s32.totalorder %s59, %s60
    %p71 = scmp.eq.s32.totalorder %s25, 0
    %p72 = por %p70, %p71
    %p73 = scmp.ne.s32.totalorder %s59, %s60
    %p74 = scmp.eq.s32.totalorder %s26, 1
    %p75 = por %p73, %p74
    %p77 = scmp.ne.s32.totalorder %s60, %s76
    %p78 = scmp.eq.s32.totalorder %s26, 0
    %p79 = por %p77, %p78
    %s81 = sadd.s32 %s80, 1
    %p84 = scmp.eq.s32.totalorder %s20, 1
    %p85 = scmp.ne.s32.totalorder %s80, %s82
    %p86 = scmp.eq.s32.totalorder %s20, 0
    %p87 = por %p85, %p86
    %p88 = scmp.ne.s32.totalorder %s80, %s82
    %p89 = scmp.eq.s32.totalorder %s25, 1
    %p90 = por %p88, %p89
    %p91 = scmp.ne.s32.totalorder %s82, %s83
    %p92 = scmp.eq.s32.totalorder %s25, 0
    %p93 = por %p91, %p92
    %p94 = scmp.ne.s32.totalorder %s82, %s83
    %p95 = scmp.eq.s32.totalorder %s26, 1
    %p96 = por %p94, %p95
    %p98 = scmp.ne.s32.totalorder %s83, %s97
    %p99 = scmp.eq.s32.totalorder %s26, 0
    %p100 = por %p98, %p99
    %s102 = sadd.s32 %s101, 1
    %p105 = scmp.eq.s32.totalorder %s20, 1
    %p106 = scmp.ne.s32.totalorder %s101, %s103
    %p107 = scmp.eq.s32.totalorder %s20, 0
    %p108 = por %p106, %p107
    %p109 = scmp.ne.s32.totalorder %s101, %s103
    %p110 = scmp.eq.s32.totalorder %s25, 1
    %p111 = por %p109, %p110
    %p112 = scmp.ne.s32.totalorder %s103, %s104
    %p113 = scmp.eq.s32.totalorder %s25, 0
    %p114 = por %p112, %p113
    %p115 = scmp.ne.s32.totalorder %s103, %s104
    %p116 = scmp.eq.s32.totalorder %s26, 1
    %p117 = por %p115, %p116
    %p119 = scmp.ne.s32.totalorder %s104, %s118
    %p120 = scmp.eq.s32.totalorder %s26, 0
    %p121 = por %p119, %p120
    %s123 = sadd.s32 %s122, 1
    %p126 = scmp.eq.s32.totalorder %s20, 1
    %p127 = scmp.ne.s32.totalorder %s122, %s124
    %p128 = scmp.eq.s32.totalorder %s20, 0
    %p129 = por %p127, %p128
    %p130 = scmp.ne.s32.totalorder %s122, %s124
    %p131 = scmp.eq.s32.totalorder %s25, 1
    %p132 = por %p130, %p131
    %p133 = scmp.ne.s32.totalorder %s124, %s125
    %p134 = scmp.eq.s32.totalorder %s25, 0
    %p135 = por %p133, %p134
    %p136 = scmp.ne.s32.totalorder %s124, %s125
    %p137 = scmp.eq.s32.totalorder %s26, 1
    %p138 = por %p136, %p137
    %p140 = scmp.ne.s32.totalorder %s125, %s139
    %p141 = scmp.eq.s32.totalorder %s26, 0
    %p142 = por %p140, %p141
    %s144 = sadd.s32 %s143, 1
    %p147 = scmp.eq.s32.totalorder %s20, 1
    %p148 = scmp.ne.s32.totalorder %s143, %s145
    %p149 = scmp.eq.s32.totalorder %s20, 0
    %p150 = por %p148, %p149
    %p151 = scmp.ne.s32.totalorder %s143, %s145
    %p152 = scmp.eq.s32.totalorder %s25, 1
    %p153 = por %p151, %p152
    %p154 = scmp.ne.s32.totalorder %s145, %s146
    %p155 = scmp.eq.s32.totalorder %s25, 0
    %p156 = por %p154, %p155
    %p157 = scmp.ne.s32.totalorder %s145, %s146
    %p158 = scmp.eq.s32.totalorder %s26, 1
    %p159 = por %p157, %p158
    %p161 = scmp.ne.s32.totalorder %s146, %s160
    %p162 = scmp.eq.s32.totalorder %s26, 0
    %p163 = por %p161, %p162
    %s165 = sadd.s32 %s164, 1
    %p168 = scmp.eq.s32.totalorder %s20, 1
    %p169 = scmp.ne.s32.totalorder %s164, %s166
    %p170 = scmp.eq.s32.totalorder %s20, 0
    %p171 = por %p169, %p170
    %p172 = scmp.ne.s32.totalorder %s164, %s166
    %p173 = scmp.eq.s32.totalorder %s25, 1
    %p174 = por %p172, %p173
    %p175 = scmp.ne.s32.totalorder %s166, %s167
    %p176 = scmp.eq.s32.totalorder %s25, 0
    %p177 = por %p175, %p176
    %p178 = scmp.ne.s32.totalorder %s166, %s167
    %p179 = scmp.eq.s32.totalorder %s26, 1
    %p180 = por %p178, %p179
    %p182 = scmp.ne.s32.totalorder %s167, %s181
    %p183 = scmp.eq.s32.totalorder %s26, 0
    %p184 = por %p182, %p183
    %s186 = sadd.s32 %s185, 1
    %p189 = scmp.eq.s32.totalorder %s20, 1
    %p190 = scmp.ne.s32.totalorder %s185, %s187
    %p191 = scmp.eq.s32.totalorder %s20, 0
    %p192 = por %p190, %p191
    %p193 = scmp.ne.s32.totalorder %s185, %s187
    %p194 = scmp.eq.s32.totalorder %s25, 1
    %p195 = por %p193, %p194
    %p196 = scmp.ne.s32.totalorder %s187, %s188
    %p197 = scmp.eq.s32.totalorder %s25, 0
    %p198 = por %p196, %p197
    %p199 = scmp.ne.s32.totalorder %s187, %s188
    %p200 = scmp.eq.s32.totalorder %s26, 1
    %p201 = por %p199, %p200
    %p203 = scmp.ne.s32.totalorder %s188, %s202
    %p204 = scmp.eq.s32.totalorder %s26, 0
    %p205 = por %p203, %p204
    %s207 = sadd.s32 %s206, 1
    %p210 = scmp.eq.s32.totalorder %s20, 1
    %p211 = scmp.ne.s32.totalorder %s206, %s208
    %p212 = scmp.eq.s32.totalorder %s20, 0
    %p213 = por %p211, %p212
    %p214 = scmp.ne.s32.totalorder %s206, %s208
    %p215 = scmp.eq.s32.totalorder %s25, 1
    %p216 = por %p214, %p215
    %p217 = scmp.ne.s32.totalorder %s208, %s209
    %p218 = scmp.eq.s32.totalorder %s25, 0
    %p219 = por %p217, %p218
    %p220 = scmp.ne.s32.totalorder %s208, %s209
    %p221 = scmp.eq.s32.totalorder %s26, 1
    %p222 = por %p220, %p221
    %p224 = scmp.ne.s32.totalorder %s209, %s223
    %p225 = scmp.eq.s32.totalorder %s26, 0
    %p226 = por %p224, %p225
    %s228 = sadd.s32 %s227, 1
    %p231 = scmp.eq.s32.totalorder %s20, 1
    %p232 = scmp.ne.s32.totalorder %s227, %s229
    %p233 = scmp.eq.s32.totalorder %s20, 0
    %p234 = por %p232, %p233
    %p235 = scmp.ne.s32.totalorder %s227, %s229
    %p236 = scmp.eq.s32.totalorder %s25, 1
    %p237 = por %p235, %p236
    %p238 = scmp.ne.s32.totalorder %s229, %s230
    %p239 = scmp.eq.s32.totalorder %s25, 0
    %p240 = por %p238, %p239
    %p241 = scmp.ne.s32.totalorder %s229, %s230
    %p242 = scmp.eq.s32.totalorder %s26, 1
    %p243 = por %p241, %p242
    %p245 = scmp.ne.s32.totalorder %s230, %s244
    %p246 = scmp.eq.s32.totalorder %s26, 0
    %p247 = por %p245, %p246
    %s249 = sadd.s32 %s248, 1
    %p252 = scmp.eq.s32.totalorder %s20, 1
    %p253 = scmp.ne.s32.totalorder %s248, %s250
    %p254 = scmp.eq.s32.totalorder %s20, 0
    %p255 = por %p253, %p254
    %p256 = scmp.ne.s32.totalorder %s248, %s250
    %p257 = scmp.eq.s32.totalorder %s25, 1
    %p258 = por %p256, %p257
    %p259 = scmp.ne.s32.totalorder %s250, %s251
    %p260 = scmp.eq.s32.totalorder %s25, 0
    %p261 = por %p259, %p260
    %p262 = scmp.ne.s32.totalorder %s250, %s251
    %p263 = scmp.eq.s32.totalorder %s26, 1
    %p264 = por %p262, %p263
    %p266 = scmp.ne.s32.totalorder %s251, %s265
    %p267 = scmp.eq.s32.totalorder %s26, 0
    %p268 = por %p266, %p267
    %s270 = sadd.s32 %s269, 1
    %p273 = scmp.eq.s32.totalorder %s20, 1
    %p274 = scmp.ne.s32.totalorder %s269, %s271
    %p275 = scmp.eq.s32.totalorder %s20, 0
    %p276 = por %p274, %p275
    %p277 = scmp.ne.s32.totalorder %s269, %s271
    %p278 = scmp.eq.s32.totalorder %s25, 1
    %p279 = por %p277, %p278
    %p280 = scmp.ne.s32.totalorder %s271, %s272
    %p281 = scmp.eq.s32.totalorder %s25, 0
    %p282 = por %p280, %p281
    %p283 = scmp.ne.s32.totalorder %s271, %s272
    %p284 = scmp.eq.s32.totalorder %s26, 1
    %p285 = por %p283, %p284
    %p287 = scmp.ne.s32.totalorder %s272, %s286
    %p288 = scmp.eq.s32.totalorder %s26, 0
    %p289 = por %p287, %p288
    %s291 = sadd.s32 %s290, 1
    %p294 = scmp.eq.s32.totalorder %s20, 1
    %p295 = scmp.ne.s32.totalorder %s290, %s292
    %p296 = scmp.eq.s32.totalorder %s20, 0
    %p297 = por %p295, %p296
    %p298 = scmp.ne.s32.totalorder %s290, %s292
    %p299 = scmp.eq.s32.totalorder %s25, 1
    %p300 = por %p298, %p299
    %p301 = scmp.ne.s32.totalorder %s292, %s293
    %p302 = scmp.eq.s32.totalorder %s25, 0
    %p303 = por %p301, %p302
    %p304 = scmp.ne.s32.totalorder %s292, %s293
    %p305 = scmp.eq.s32.totalorder %s26, 1
    %p306 = por %p304, %p305
    %p308 = scmp.ne.s32.totalorder %s293, %s307
    %p309 = scmp.eq.s32.totalorder %s26, 0
    %p310 = por %p308, %p309
    %s312 = sadd.s32 %s311, 1
    %p315 = scmp.eq.s32.totalorder %s20, 1
    %p316 = scmp.ne.s32.totalorder %s311, %s313
    %p317 = scmp.eq.s32.totalorder %s20, 0
    %p318 = por %p316, %p317
    %p319 = scmp.ne.s32.totalorder %s311, %s313
    %p320 = scmp.eq.s32.totalorder %s25, 1
    %p321 = por %p319, %p320
    %p322 = scmp.ne.s32.totalorder %s313, %s314
    %p323 = scmp.eq.s32.totalorder %s25, 0
    %p324 = por %p322, %p323
    %p325 = scmp.ne.s32.totalorder %s313, %s314
    %p326 = scmp.eq.s32.totalorder %s26, 1
    %p327 = por %p325, %p326
    %p329 = scmp.ne.s32.totalorder %s314, %s328
    %p330 = scmp.eq.s32.totalorder %s26, 0
    %p331 = por %p329, %p330
    %s332 = ssub.s32 %s20, %s27
    %p333 = scmp.eq.s32.totalorder %s332, 0
    %s335 = sadd.s32 %s334, 1
    %s336 = scalar_select %p333, %s334, %s335
    %p339 = pneg %p333
    %p340 = scmp.eq.s32.totalorder %s20, 1
    %p341 = por %p339, %p340
    %p342 = scmp.ne.s32.totalorder %s334, %s337
    %p343 = scmp.eq.s32.totalorder %s20, 0
    %p344 = por %p342, %p343
    %p345 = scmp.ne.s32.totalorder %s334, %s337
    %p346 = scmp.eq.s32.totalorder %s25, 1
    %p347 = por %p345, %p346
    %p348 = scmp.ne.s32.totalorder %s337, %s338
    %p349 = scmp.eq.s32.totalorder %s25, 0
    %p350 = por %p348, %p349
    %p351 = scmp.ne.s32.totalorder %s337, %s338
    %p352 = scmp.eq.s32.totalorder %s26, 1
    %p353 = por %p351, %p352
    %p355 = scmp.ne.s32.totalorder %s338, %s354
    %p356 = scmp.eq.s32.totalorder %s26, 0
    %p357 = por %p355, %p356
    %p358 = scmp.le.s32.totalorder 1, %s20
    %p359 = scmp.lt.s32.totalorder %s20, 3
    %p360 = pnand %p358, %p359
    %p361 = pneg %p360
    // Predicated region
    $region9: #{bert_forward.5} parent=5 // pred_check
      _
    $region10: #{bert_forward.5} parent=5 // pred_check_branch
      %363 = sbr.rel (%p360) target = $region12
    $region11: #{bert_forward.5} parent=5 // pred_region
      %s364 = ssub.s32 %s20, 1
      // Predicated region
      $region13: #{bert_forward.5} parent=11 // pred_check
        %p365 = pneg %p93
      $region14: #{bert_forward.5} parent=11 // pred_check_branch
        %367 = sbr.rel (%p365) target = $region16
      $region15: #{bert_forward.5} parent=11 // pred_region
        _
      $region16: #{bert_forward.5} parent=11 // pred_fallthru
        _
      // Predicated region
      $region17: #{bert_forward.5} parent=11 // pred_check
        %p368 = pneg %p114
      $region18: #{bert_forward.5} parent=11 // pred_check_branch
        %370 = sbr.rel (%p368) target = $region20
      $region19: #{bert_forward.5} parent=11 // pred_region
        _
      $region20: #{bert_forward.5} parent=11 // pred_fallthru
        _
      // Predicated region
      $region21: #{bert_forward.5} parent=11 // pred_check
        %p371 = pneg %p135
      $region22: #{bert_forward.5} parent=11 // pred_check_branch
        %373 = sbr.rel (%p371) target = $region24
      $region23: #{bert_forward.5} parent=11 // pred_region
        _
      $region24: #{bert_forward.5} parent=11 // pred_fallthru
        _
      // Predicated region
      $region25: #{bert_forward.5} parent=11 // pred_check
        %p374 = pneg %p156
      $region26: #{bert_forward.5} parent=11 // pred_check_branch
        %376 = sbr.rel (%p374) target = $region28
      $region27: #{bert_forward.5} parent=11 // pred_region
        _
      $region28: #{bert_forward.5} parent=11 // pred_fallthru
        _
      // Predicated region
      $region29: #{bert_forward.5} parent=11 // pred_check
        %p377 = pneg %p177
      $region30: #{bert_forward.5} parent=11 // pred_check_branch
        %379 = sbr.rel (%p377) target = $region32
      $region31: #{bert_forward.5} parent=11 // pred_region
        _
      $region32: #{bert_forward.5} parent=11 // pred_fallthru
        _
      // Predicated region
      $region33: #{bert_forward.5} parent=11 // pred_check
        %p380 = pneg %p198
      $region34: #{bert_forward.5} parent=11 // pred_check_branch
        %382 = sbr.rel (%p380) target = $region36
      $region35: #{bert_forward.5} parent=11 // pred_region
        _
      $region36: #{bert_forward.5} parent=11 // pred_fallthru
        _
      // Predicated region
      $region37: #{bert_forward.5} parent=11 // pred_check
        %p383 = pneg %p219
      $region38: #{bert_forward.5} parent=11 // pred_check_branch
        %385 = sbr.rel (%p383) target = $region40
      $region39: #{bert_forward.5} parent=11 // pred_region
        _
      $region40: #{bert_forward.5} parent=11 // pred_fallthru
        _
      // Predicated region
      $region41: #{bert_forward.5} parent=11 // pred_check
        %p386 = pneg %p240
      $region42: #{bert_forward.5} parent=11 // pred_check_branch
        %388 = sbr.rel (%p386) target = $region44
      $region43: #{bert_forward.5} parent=11 // pred_region
        _
      $region44: #{bert_forward.5} parent=11 // pred_fallthru
        _
      // Predicated region
      $region45: #{bert_forward.5} parent=11 // pred_check
        %p389 = pneg %p261
      $region46: #{bert_forward.5} parent=11 // pred_check_branch
        %391 = sbr.rel (%p389) target = $region48
      $region47: #{bert_forward.5} parent=11 // pred_region
        _
      $region48: #{bert_forward.5} parent=11 // pred_fallthru
        _
      // Predicated region
      $region49: #{bert_forward.5} parent=11 // pred_check
        %p392 = pneg %p282
      $region50: #{bert_forward.5} parent=11 // pred_check_branch
        %394 = sbr.rel (%p392) target = $region52
      $region51: #{bert_forward.5} parent=11 // pred_region
        _
      $region52: #{bert_forward.5} parent=11 // pred_fallthru
        _
      // Predicated region
      $region53: #{bert_forward.5} parent=11 // pred_check
        %p395 = pneg %p303
      $region54: #{bert_forward.5} parent=11 // pred_check_branch
        %397 = sbr.rel (%p395) target = $region56
      $region55: #{bert_forward.5} parent=11 // pred_region
        _
      $region56: #{bert_forward.5} parent=11 // pred_fallthru
        _
      // Predicated region
      $region57: #{bert_forward.5} parent=11 // pred_check
        %p398 = pneg %p324
      $region58: #{bert_forward.5} parent=11 // pred_check_branch
        %400 = sbr.rel (%p398) target = $region60
      $region59: #{bert_forward.5} parent=11 // pred_region
        _
      $region60: #{bert_forward.5} parent=11 // pred_fallthru
        _
    $region12: #{bert_forward.5} parent=5 // pred_fallthru
      _
    %p401 = scmp.lt.s32.totalorder %s20, 2
    // Predicated region
    $region61: #{bert_forward.5} parent=5 // pred_check
      %p402 = pneg %p401
    $region62: #{bert_forward.5} parent=5 // pred_check_branch
      %404 = sbr.rel (%p402) target = $region64
    $region63: #{bert_forward.5} parent=5 // pred_region
      // Predicated region
      $region65: #{bert_forward.5} parent=63 // pred_check
        %p405 = pneg %p40
      $region66: #{bert_forward.5} parent=63 // pred_check_branch
        %407 = sbr.rel (%p405) target = $region68
      $region67: #{bert_forward.5} parent=63 // pred_region
        %p408 = scmp.lt.s32.totalorder %s20, 1
        %s409 = scalar_select %p408, %s20, 1
        %s410 = smul.addr %s409, 4
        %s411 = scalar_lea.vmem %s0, %s410
      $region68: #{bert_forward.5} parent=63 // pred_fallthru
        _
      // Predicated region
      $region69: #{bert_forward.5} parent=63 // pred_check
        %p412 = pneg %p66
      $region70: #{bert_forward.5} parent=63 // pred_check_branch
        %414 = sbr.rel (%p412) target = $region72
      $region71: #{bert_forward.5} parent=63 // pred_region
        %p415 = scmp.lt.s32.totalorder %s20, 1
        %s416 = scalar_select %p415, %s20, 1
        %s417 = scalar_lea.vmem %s1, %s416
      $region72: #{bert_forward.5} parent=63 // pred_fallthru
        _
    $region64: #{bert_forward.5} parent=5 // pred_fallthru
      _
    %p418 = scmp.le.s32.totalorder 1, %s20
    %p419 = scmp.lt.s32.totalorder %s20, 3
    %p420 = pnand %p418, %p419
    %p421 = pneg %p420
    // Predicated region
    $region73: #{bert_forward.5} parent=5 // pred_check
      _
    $region74: #{bert_forward.5} parent=5 // pred_check_branch
      %423 = sbr.rel (%p420) target = $region76
    $region75: #{bert_forward.5} parent=5 // pred_region
      %s424 = ssub.s32 %s20, 1
      %p425 = scmp.lt.s32.totalorder %s25, 1
      %s426 = scalar_select %p425, %s25, 1
      %s427 = smul.addr %s426, 4
      %s428 = scalar_lea.vmem %s0, %s427
      %p429 = pneg %p46
      %p430 = pneg %p43
      %p431 = scmp.lt.s32.totalorder %s25, 1
      %s432 = scalar_select %p431, %s25, 1
      %s433 = scalar_lea.vmem %s1, %s432
      %p434 = pneg %p72
      %p435 = pneg %p69
      %p436 = pneg %p93
      %p437 = pneg %p90
      %p438 = pneg %p114
      %p439 = pneg %p111
      %p440 = pneg %p135
      %p441 = pneg %p132
      %p442 = pneg %p156
      %p443 = pneg %p153
      %p444 = pneg %p177
      %p445 = pneg %p174
      %p446 = pneg %p198
      %p447 = pneg %p195
      %p448 = pneg %p219
      %p449 = pneg %p216
      %p450 = pneg %p240
      %p451 = pneg %p237
      %p452 = pneg %p261
      %p453 = pneg %p258
      %p454 = pneg %p282
      %p455 = pneg %p279
      %p456 = pneg %p303
      %p457 = pneg %p300
      %p458 = pneg %p324
      %p459 = pneg %p321
      %p460 = pneg %p350
      %p461 = pneg %p347
      %p462 = scmp.lt.s32.totalorder %s25, 1
      %s463 = scalar_select %p462, %s25, 1
      %s464 = smul.addr %s463, 4
      %s465 = scalar_lea.vmem %s14, %s464
      %p466 = scmp.lt.s32.totalorder %s25, 1
      %s467 = scalar_select %p466, %s25, 1
      %s468 = smul.addr %s467, 4
      %s469 = scalar_lea.vmem %s0, %s468
      %p470 = scmp.lt.s32.totalorder %s25, 1
      %s471 = scalar_select %p470, %s25, 1
      %s472 = scalar_lea.vmem %s1, %s471
      %p473 = scmp.lt.s32.totalorder %s25, 1
      %s474 = scalar_select %p473, %s25, 1
      %s475 = smul.addr %s474, 4
      %s476 = scalar_lea.vmem %s14, %s475
      %v478 = vld [vmem:[%s469] sm:$0xf]
      %v479 = vunpack.c.l.bf16 %v478
      %v480 = vld [vmem:[%s472] sm:$0x1]
      %v481 = vld [vmem:[%s2] sm:$0xf]
      %v482 = vld [vmem:[%s2 + $0x4] sm:$0xf]
      %v483 = vld [vmem:[%s2 + $0x8] sm:$0xf]
      %v484 = vld [vmem:[%s2 + $0xc] sm:$0xf]
      %v485 = vld [vmem:[%s3] sm:$0x1]
      %v486 = vunpack.c.l.bf16 %v485
      %v487 = vlaneseq
      %v488 = vshrl.u32 %v487, 7
      %v489 = vsub.s32 0, %v488
      %v490 = vrot.slane %v486, %v489
      %v495 = vunpack.c.l.b16 %v481
      %v496 = vunpack.c.l.b16 %v482
      %v497 = vunpack.c.l.b16 %v483
      %v498 = vunpack.c.l.b16 %v484
      %v499 = vpack.c.b16 %v496, %v495
      %v500 = vpack.c.b16 %v498, %v497
      %vm503 = vcmask 261120
      %v505 = vsel %vm503, %v478, 0
      %507 = vmatprep.subr.bf16.mxu0 0
      %508 = vmatpush1.bf16.msra.mxu0 %v499
      %509 = vmatprep.subr.bf16.mxu0 0
      %510 = vmatpush1.bf16.msra.mxu0 %v500
      %511 = vmatprep.subr.bf16.mxu0 0
      %512 = vmatpush1.bf16.msra.mxu0 0
      %513 = vmatprep.subr.bf16.mxu0 0
      %514 = vmatpush1.bf16.msra.mxu0 0
      %515 = vmatprep.subr.bf16.mxu0 0
      %516 = vmatpush1.bf16.msra.mxu0 0
      %517 = vmatprep.subr.bf16.mxu0 0
      %518 = vmatpush1.bf16.msra.mxu0 0
      %519 = vmatprep.subr.bf16.mxu0 0
      %520 = vmatpush1.bf16.msra.mxu0 0
      %521 = vmatprep.subr.bf16.mxu0 0
      %522 = vmatpush1.bf16.msra.mxu0 0
      %523 = vmatprep.subr.bf16.mxu0 0
      %524 = vmatpush1.bf16.msra.mxu0 0
      %525 = vmatprep.subr.bf16.mxu0 0
      %526 = vmatpush1.bf16.msra.mxu0 0
      %527 = vmatprep.subr.bf16.mxu0 0
      %528 = vmatpush1.bf16.msra.mxu0 0
      %529 = vmatprep.subr.bf16.mxu0 0
      %530 = vmatpush1.bf16.msra.mxu0 0
      %531 = vmatprep.subr.bf16.mxu0 0
      %532 = vmatpush1.bf16.msra.mxu0 0
      %533 = vmatprep.subr.bf16.mxu0 0
      %534 = vmatpush1.bf16.msra.mxu0 0
      %535 = vmatprep.subr.bf16.mxu0 0
      %536 = vmatpush1.bf16.msra.mxu0 0
      %537 = vmatprep.subr.bf16.mxu0 0
      %538 = vmatpush1.bf16.msra.mxu0 0
      %539 = vmatprep.mubr.bf16.mxu0 0
      %540 = vmatmul.mubr.bf16.gmra.mrb[0].mxu0 %v505
      %v541 = vpop.f32.mrb[0].mxu0
      %v542 = vadd.f32 %v490, %v541
      %v543 = vpop.f32.mrb[0].mxu0
      %v544 = vpop.f32.mrb[0].mxu0
      %v545 = vpop.f32.mrb[0].mxu0
      %546 = vdwg.mxu0
      %548 = vrot.lane.b32.xlu0 %v542, 96
      %v549 = vpop.permute.xlu0 %548
      %vm550 = vcmask 130048
      %v551 = vsel %vm550, %v542, 0
      %v553 = vsel %vm550, %v549, 0
      %555 = vmatprep.subr.mxu0 0.0
      %556 = vmatpush1.xpose.msra.mxu0 %v553
      %557 = vmatprep.subr.mxu0 0.0
      %558 = vmatpush1.xpose.msra.mxu0 0.0
      %559 = vmatprep.subr.mxu0 0.0
      %560 = vmatpush1.xpose.msra.mxu0 0.0
      %561 = vmatprep.subr.mxu0 0.0
      %562 = vmatpush1.xpose.msra.mxu0 0.0
      %563 = vmatprep.subr.mxu0 0.0
      %564 = vmatpush1.xpose.msra.mxu0 0.0
      %565 = vmatprep.subr.mxu0 0.0
      %566 = vmatpush1.xpose.msra.mxu0 0.0
      %567 = vmatprep.subr.mxu0 0.0
      %568 = vmatpush1.xpose.msra.mxu0 0.0
      %569 = vmatprep.subr.mxu0 0.0
      %570 = vmatpush1.xpose.msra.mxu0 0.0
      %571 = vmatprep.subr.mxu0 0.0
      %572 = vmatpush1.xpose.msra.mxu0 0.0
      %573 = vmatprep.subr.mxu0 0.0
      %574 = vmatpush1.xpose.msra.mxu0 0.0
      %575 = vmatprep.subr.mxu0 0.0
      %576 = vmatpush1.xpose.msra.mxu0 0.0
      %577 = vmatprep.subr.mxu0 0.0
      %578 = vmatpush1.xpose.msra.mxu0 0.0
      %579 = vmatprep.subr.mxu0 0.0
      %580 = vmatpush1.xpose.msra.mxu0 0.0
      %581 = vmatprep.subr.mxu0 0.0
      %582 = vmatpush1.xpose.msra.mxu0 0.0
      %583 = vmatprep.subr.mxu0 0.0
      %584 = vmatpush1.xpose.msra.mxu0 0.0
      %585 = vmatprep.subr.mxu0 0.0
      %586 = vmatpush1.xpose.msra.mxu0 0.0
      %587 = vmatprep.subr.mxu0 0.0
      %588 = vmatpush1.xpose.msra.mxu0 0.0
      %589 = vmatprep.subr.mxu0 0.0
      %590 = vmatpush1.xpose.msra.mxu0 0.0
      %591 = vmatprep.subr.mxu0 0.0
      %592 = vmatpush1.xpose.msra.mxu0 0.0
      %593 = vmatprep.subr.mxu0 0.0
      %594 = vmatpush1.xpose.msra.mxu0 0.0
      %595 = vmatprep.subr.mxu0 0.0
      %596 = vmatpush1.xpose.msra.mxu0 0.0
      %597 = vmatprep.subr.mxu0 0.0
      %598 = vmatpush1.xpose.msra.mxu0 0.0
      %599 = vmatprep.subr.mxu0 0.0
      %600 = vmatpush1.xpose.msra.mxu0 0.0
      %601 = vmatprep.subr.mxu0 0.0
      %602 = vmatpush1.xpose.msra.mxu0 0.0
      %603 = vmatprep.subr.mxu0 0.0
      %604 = vmatpush1.xpose.msra.mxu0 0.0
      %605 = vmatprep.subr.mxu0 0.0
      %606 = vmatpush1.xpose.msra.mxu0 0.0
      %607 = vmatprep.subr.mxu0 0.0
      %608 = vmatpush1.xpose.msra.mxu0 0.0
      %609 = vmatprep.subr.mxu0 0.0
      %610 = vmatpush1.xpose.msra.mxu0 0.0
      %611 = vmatprep.subr.mxu0 0.0
      %612 = vmatpush1.xpose.msra.mxu0 0.0
      %613 = vmatprep.subr.mxu0 0.0
      %614 = vmatpush1.xpose.msra.mxu0 0.0
      %615 = vmatprep.subr.mxu0 0.0
      %616 = vmatpush1.xpose.msra.mxu0 0.0
      %617 = vmatprep.subr.mxu0 0.0
      %618 = vmatpush1.xpose.msra.mxu0 0.0
      %619 = vmatprep.mubr.f32.mxu0 0.0
      %620 = vmatmul.mubr.f32.gmra.mrb[0].mxu0 %v551
      %v621 = vpop.f32.mrb[0].mxu0
      %v622 = vadd.f32 0.0, %v621
      %v623 = vpop.f32.mrb[0].mxu0
      %624 = vdwg.mxu0
      %v625 = vmul.f32 %v622, 0.25
      %v627 = vlaneseq
      %v628 = vshrl.u32 %v627, 7
      %v629 = vsub.s32 0, %v628
      %v630 = vrot.slane %v480, %v629
      %v632 = vadd.f32 %v625, %v630
      %vm633 = vcmask 64512
      %v634 = vsel %vm633, %v632, -inf
      %635 = vmax.xlane.f32.xlu0 %v634
      %v636 = vpop.xlane.xlu0 %635
      %v637 = vsub.f32 %v632, %v636
      %v638 = vmul.f32 %v637, 1.442695
      %v639 = vpow.pop %v638
      %v640 = vsel %vm633, %v639, 0.0
      %641 = vadd.xlane.f32.xlu0 %v640
      %v642 = vpop.xlane.xlu0 %641
      %v643 = vrcp.pop %v642
      %v644 = vmul.f32 %v639, %v643
      %645 = vrot.lane.b32.xlu0 %v542, 64
      %v646 = vpop.permute.xlu0 %645
      %v649 = vsel %vm633, %v644, 0
      %651 = vmatprep.subr.mxu0 0.0
      %652 = vmatpush1.msra.mxu0 %v646
      %653 = vmatprep.subr.mxu0 0.0
      %654 = vmatpush1.msra.mxu0 0.0
      %655 = vmatprep.subr.mxu0 0.0
      %656 = vmatpush1.msra.mxu0 0.0
      %657 = vmatprep.subr.mxu0 0.0
      %658 = vmatpush1.msra.mxu0 0.0
      %659 = vmatprep.subr.mxu0 0.0
      %660 = vmatpush1.msra.mxu0 0.0
      %661 = vmatprep.subr.mxu0 0.0
      %662 = vmatpush1.msra.mxu0 0.0
      %663 = vmatprep.subr.mxu0 0.0
      %664 = vmatpush1.msra.mxu0 0.0
      %665 = vmatprep.subr.mxu0 0.0
      %666 = vmatpush1.msra.mxu0 0.0
      %667 = vmatprep.subr.mxu0 0.0
      %668 = vmatpush1.msra.mxu0 0.0
      %669 = vmatprep.subr.mxu0 0.0
      %670 = vmatpush1.msra.mxu0 0.0
      %671 = vmatprep.subr.mxu0 0.0
      %672 = vmatpush1.msra.mxu0 0.0
      %673 = vmatprep.subr.mxu0 0.0
      %674 = vmatpush1.msra.mxu0 0.0
      %675 = vmatprep.subr.mxu0 0.0
      %676 = vmatpush1.msra.mxu0 0.0
      %677 = vmatprep.subr.mxu0 0.0
      %678 = vmatpush1.msra.mxu0 0.0
      %679 = vmatprep.subr.mxu0 0.0
      %680 = vmatpush1.msra.mxu0 0.0
      %681 = vmatprep.subr.mxu0 0.0
      %682 = vmatpush1.msra.mxu0 0.0
      %683 = vmatprep.subr.mxu0 0.0
      %684 = vmatpush1.msra.mxu0 0.0
      %685 = vmatprep.subr.mxu0 0.0
      %686 = vmatpush1.msra.mxu0 0.0
      %687 = vmatprep.subr.mxu0 0.0
      %688 = vmatpush1.msra.mxu0 0.0
      %689 = vmatprep.subr.mxu0 0.0
      %690 = vmatpush1.msra.mxu0 0.0
      %691 = vmatprep.subr.mxu0 0.0
      %692 = vmatpush1.msra.mxu0 0.0
      %693 = vmatprep.subr.mxu0 0.0
      %694 = vmatpush1.msra.mxu0 0.0
      %695 = vmatprep.subr.mxu0 0.0
      %696 = vmatpush1.msra.mxu0 0.0
      %697 = vmatprep.subr.mxu0 0.0
      %698 = vmatpush1.msra.mxu0 0.0
      %699 = vmatprep.subr.mxu0 0.0
      %700 = vmatpush1.msra.mxu0 0.0
      %701 = vmatprep.subr.mxu0 0.0
      %702 = vmatpush1.msra.mxu0 0.0
      %703 = vmatprep.subr.mxu0 0.0
      %704 = vmatpush1.msra.mxu0 0.0
      %705 = vmatprep.subr.mxu0 0.0
      %706 = vmatpush1.msra.mxu0 0.0
      %707 = vmatprep.subr.mxu0 0.0
      %708 = vmatpush1.msra.mxu0 0.0
      %709 = vmatprep.subr.mxu0 0.0
      %710 = vmatpush1.msra.mxu0 0.0
      %711 = vmatprep.subr.mxu0 0.0
      %712 = vmatpush1.msra.mxu0 0.0
      %713 = vmatprep.subr.mxu0 0.0
      %714 = vmatpush1.msra.mxu0 0.0
      %715 = vmatprep.mubr.f32.mxu0 0.0
      %716 = vmatmul.mubr.f32.gmra.mrb[0].mxu0 %v649
      %v717 = vpop.f32.mrb[0].mxu0
      %v718 = vadd.f32 0.0, %v717
      %v719 = vpop.f32.mrb[0].mxu0
      %720 = vdwg.mxu0
      %v721 = vpack.c.bf16 %v718, %v718
      %v722 = vld [vmem:[%s4] sm:$0xf]
      %v723 = vld [vmem:[%s4 + $0x4] sm:$0xf]
      %724 = vrot.lane.b32.xlu0 %v542, 112
      %v725 = vpop.permute.xlu0 %724
      %726 = vrot.lane.b32.xlu0 %v542, 80
      %v727 = vpop.permute.xlu0 %726
      %v728 = vsel %vm550, %v725, 0
      %v730 = vsel %vm550, %v727, 0
      %732 = vmatprep.subr.mxu0 0.0
      %733 = vmatpush1.xpose.msra.mxu0 %v730
      %734 = vmatprep.subr.mxu0 0.0
      %735 = vmatpush1.xpose.msra.mxu0 0.0
      %736 = vmatprep.subr.mxu0 0.0
      %737 = vmatpush1.xpose.msra.mxu0 0.0
      %738 = vmatprep.subr.mxu0 0.0
      %739 = vmatpush1.xpose.msra.mxu0 0.0
      %740 = vmatprep.subr.mxu0 0.0
      %741 = vmatpush1.xpose.msra.mxu0 0.0
      %742 = vmatprep.subr.mxu0 0.0
      %743 = vmatpush1.xpose.msra.mxu0 0.0
      %744 = vmatprep.subr.mxu0 0.0
      %745 = vmatpush1.xpose.msra.mxu0 0.0
      %746 = vmatprep.subr.mxu0 0.0
      %747 = vmatpush1.xpose.msra.mxu0 0.0
      %748 = vmatprep.subr.mxu0 0.0
      %749 = vmatpush1.xpose.msra.mxu0 0.0
      %750 = vmatprep.subr.mxu0 0.0
      %751 = vmatpush1.xpose.msra.mxu0 0.0
      %752 = vmatprep.subr.mxu0 0.0
      %753 = vmatpush1.xpose.msra.mxu0 0.0
      %754 = vmatprep.subr.mxu0 0.0
      %755 = vmatpush1.xpose.msra.mxu0 0.0
      %756 = vmatprep.subr.mxu0 0.0
      %757 = vmatpush1.xpose.msra.mxu0 0.0
      %758 = vmatprep.subr.mxu0 0.0
      %759 = vmatpush1.xpose.msra.mxu0 0.0
      %760 = vmatprep.subr.mxu0 0.0
      %761 = vmatpush1.xpose.msra.mxu0 0.0
      %762 = vmatprep.subr.mxu0 0.0
      %763 = vmatpush1.xpose.msra.mxu0 0.0
      %764 = vmatprep.subr.mxu0 0.0
      %765 = vmatpush1.xpose.msra.mxu0 0.0
      %766 = vmatprep.subr.mxu0 0.0
      %767 = vmatpush1.xpose.msra.mxu0 0.0
      %768 = vmatprep.subr.mxu0 0.0
      %769 = vmatpush1.xpose.msra.mxu0 0.0
      %770 = vmatprep.subr.mxu0 0.0
      %771 = vmatpush1.xpose.msra.mxu0 0.0
      %772 = vmatprep.subr.mxu0 0.0
      %773 = vmatpush1.xpose.msra.mxu0 0.0
      %774 = vmatprep.subr.mxu0 0.0
      %775 = vmatpush1.xpose.msra.mxu0 0.0
      %776 = vmatprep.subr.mxu0 0.0
      %777 = vmatpush1.xpose.msra.mxu0 0.0
      %778 = vmatprep.subr.mxu0 0.0
      %779 = vmatpush1.xpose.msra.mxu0 0.0
      %780 = vmatprep.subr.mxu0 0.0
      %781 = vmatpush1.xpose.msra.mxu0 0.0
      %782 = vmatprep.subr.mxu0 0.0
      %783 = vmatpush1.xpose.msra.mxu0 0.0
      %784 = vmatprep.subr.mxu0 0.0
      %785 = vmatpush1.xpose.msra.mxu0 0.0
      %786 = vmatprep.subr.mxu0 0.0
      %787 = vmatpush1.xpose.msra.mxu0 0.0
      %788 = vmatprep.subr.mxu0 0.0
      %789 = vmatpush1.xpose.msra.mxu0 0.0
      %790 = vmatprep.subr.mxu0 0.0
      %791 = vmatpush1.xpose.msra.mxu0 0.0
      %792 = vmatprep.subr.mxu0 0.0
      %793 = vmatpush1.xpose.msra.mxu0 0.0
      %794 = vmatprep.subr.mxu0 0.0
      %795 = vmatpush1.xpose.msra.mxu0 0.0
      %796 = vmatprep.mubr.f32.mxu0 0.0
      %797 = vmatmul.mubr.f32.gmra.mrb[0].mxu0 %v728
      %v798 = vpop.f32.mrb[0].mxu0
      %v799 = vadd.f32 0.0, %v798
      %v800 = vpop.f32.mrb[0].mxu0
      %801 = vdwg.mxu0
      %v802 = vmul.f32 %v799, 0.25
      %v803 = vadd.f32 %v802, %v630
      %v804 = vsel %vm633, %v803, -inf
      %805 = vmax.xlane.f32.xlu0 %v804
      %v806 = vpop.xlane.xlu0 %805
      %v807 = vsub.f32 %v803, %v806
      %v808 = vmul.f32 %v807, 1.442695
      %v809 = vpow.pop %v808
      %v810 = vsel %vm633, %v809, 0.0
      %811 = vadd.xlane.f32.xlu0 %v810
      %v812 = vpop.xlane.xlu0 %811
      %v813 = vrcp.pop %v812
      %v814 = vmul.f32 %v809, %v813
      %815 = vrot.lane.b32.xlu0 %v542, 48
      %v816 = vpop.permute.xlu0 %815
      %v819 = vsel %vm633, %v814, 0
      %821 = vmatprep.subr.mxu0 0.0
      %822 = vmatpush1.msra.mxu0 %v816
      %823 = vmatprep.subr.mxu0 0.0
      %824 = vmatpush1.msra.mxu0 0.0
      %825 = vmatprep.subr.mxu0 0.0
      %826 = vmatpush1.msra.mxu0 0.0
      %827 = vmatprep.subr.mxu0 0.0
      %828 = vmatpush1.msra.mxu0 0.0
      %829 = vmatprep.subr.mxu0 0.0
      %830 = vmatpush1.msra.mxu0 0.0
      %831 = vmatprep.subr.mxu0 0.0
      %832 = vmatpush1.msra.mxu0 0.0
      %833 = vmatprep.subr.mxu0 0.0
      %834 = vmatpush1.msra.mxu0 0.0
      %835 = vmatprep.subr.mxu0 0.0
      %836 = vmatpush1.msra.mxu0 0.0
      %837 = vmatprep.subr.mxu0 0.0
      %838 = vmatpush1.msra.mxu0 0.0
      %839 = vmatprep.subr.mxu0 0.0
      %840 = vmatpush1.msra.mxu0 0.0
      %841 = vmatprep.subr.mxu0 0.0
      %842 = vmatpush1.msra.mxu0 0.0
      %843 = vmatprep.subr.mxu0 0.0
      %844 = vmatpush1.msra.mxu0 0.0
      %845 = vmatprep.subr.mxu0 0.0
      %846 = vmatpush1.msra.mxu0 0.0
      %847 = vmatprep.subr.mxu0 0.0
      %848 = vmatpush1.msra.mxu0 0.0
      %849 = vmatprep.subr.mxu0 0.0
      %850 = vmatpush1.msra.mxu0 0.0
      %851 = vmatprep.subr.mxu0 0.0
      %852 = vmatpush1.msra.mxu0 0.0
      %853 = vmatprep.subr.mxu0 0.0
      %854 = vmatpush1.msra.mxu0 0.0
      %855 = vmatprep.subr.mxu0 0.0
      %856 = vmatpush1.msra.mxu0 0.0
      %857 = vmatprep.subr.mxu0 0.0
      %858 = vmatpush1.msra.mxu0 0.0
      %859 = vmatprep.subr.mxu0 0.0
      %860 = vmatpush1.msra.mxu0 0.0
      %861 = vmatprep.subr.mxu0 0.0
      %862 = vmatpush1.msra.mxu0 0.0
      %863 = vmatprep.subr.mxu0 0.0
      %864 = vmatpush1.msra.mxu0 0.0
      %865 = vmatprep.subr.mxu0 0.0
      %866 = vmatpush1.msra.mxu0 0.0
      %867 = vmatprep.subr.mxu0 0.0
      %868 = vmatpush1.msra.mxu0 0.0
      %869 = vmatprep.subr.mxu0 0.0
      %870 = vmatpush1.msra.mxu0 0.0
      %871 = vmatprep.subr.mxu0 0.0
      %872 = vmatpush1.msra.mxu0 0.0
      %873 = vmatprep.subr.mxu0 0.0
      %874 = vmatpush1.msra.mxu0 0.0
      %875 = vmatprep.subr.mxu0 0.0
      %876 = vmatpush1.msra.mxu0 0.0
      %877 = vmatprep.subr.mxu0 0.0
      %878 = vmatpush1.msra.mxu0 0.0
      %879 = vmatprep.subr.mxu0 0.0
      %880 = vmatpush1.msra.mxu0 0.0
      %881 = vmatprep.subr.mxu0 0.0
      %882 = vmatpush1.msra.mxu0 0.0
      %883 = vmatprep.subr.mxu0 0.0
      %884 = vmatpush1.msra.mxu0 0.0
      %885 = vmatprep.mubr.f32.mxu0 0.0
      %886 = vmatmul.mubr.f32.gmra.mrb[0].mxu0 %v819
      %v887 = vpop.f32.mrb[0].mxu0
      %v888 = vadd.f32 0.0, %v887
      %v889 = vpop.f32.mrb[0].mxu0
      %890 = vdwg.mxu0
      %v891 = vpack.c.bf16 %v888, %v888
      %v892 = vld [vmem:[%s4 + $0x8] sm:$0xf]
      %v893 = vld [vmem:[%s4 + $0xc] sm:$0xf]
      %v896 = vunpack.c.l.b16 %v892
      %v897 = vunpack.c.l.b16 %v893
      %v898 = vpack.c.b16 %v897, %v896
      %v901 = vsel %vm550, %v891, 0
      %903 = vmatprep.subr.bf16.mxu0 0
      %904 = vmatpush1.bf16.msra.mxu0 %v898
      %905 = vmatprep.subr.bf16.mxu0 0
      %906 = vmatpush1.bf16.msra.mxu0 0
      %907 = vmatprep.subr.bf16.mxu0 0
      %908 = vmatpush1.bf16.msra.mxu0 0
      %909 = vmatprep.subr.bf16.mxu0 0
      %910 = vmatpush1.bf16.msra.mxu0 0
      %911 = vmatprep.subr.bf16.mxu0 0
      %912 = vmatpush1.bf16.msra.mxu0 0
      %913 = vmatprep.subr.bf16.mxu0 0
      %914 = vmatpush1.bf16.msra.mxu0 0
      %915 = vmatprep.subr.bf16.mxu0 0
      %916 = vmatpush1.bf16.msra.mxu0 0
      %917 = vmatprep.subr.bf16.mxu0 0
      %918 = vmatpush1.bf16.msra.mxu0 0
      %919 = vmatprep.subr.bf16.mxu0 0
      %920 = vmatpush1.bf16.msra.mxu0 0
      %921 = vmatprep.subr.bf16.mxu0 0
      %922 = vmatpush1.bf16.msra.mxu0 0
      %923 = vmatprep.subr.bf16.mxu0 0
      %924 = vmatpush1.bf16.msra.mxu0 0
      %925 = vmatprep.subr.bf16.mxu0 0
      %926 = vmatpush1.bf16.msra.mxu0 0
      %927 = vmatprep.subr.bf16.mxu0 0
      %928 = vmatpush1.bf16.msra.mxu0 0
      %929 = vmatprep.subr.bf16.mxu0 0
      %930 = vmatpush1.bf16.msra.mxu0 0
      %931 = vmatprep.subr.bf16.mxu0 0
      %932 = vmatpush1.bf16.msra.mxu0 0
      %933 = vmatprep.subr.bf16.mxu0 0
      %934 = vmatpush1.bf16.msra.mxu0 0
      %935 = vmatprep.mubr.bf16.mxu0 0
      %936 = vmatmul.mubr.bf16.gmra.mrb[0].mxu0 %v901
      %v937 = vpop.f32.mrb[0].mxu0
      %v938 = vadd.f32 0.0, %v937
      %v939 = vpop.f32.mrb[0].mxu0
      %v940 = vpop.f32.mrb[0].mxu0
      %v941 = vpop.f32.mrb[0].mxu0
      %942 = vdwg.mxu0
      %v945 = vunpack.c.l.b16 %v722
      %v946 = vunpack.c.l.b16 %v723
      %v947 = vpack.c.b16 %v946, %v945
      %v950 = vsel %vm550, %v721, 0
      %952 = vmatprep.subr.bf16.mxu0 0
      %953 = vmatpush1.bf16.msra.mxu0 %v947
      %954 = vmatprep.subr.bf16.mxu0 0
      %955 = vmatpush1.bf16.msra.mxu0 0
      %956 = vmatprep.subr.bf16.mxu0 0
      %957 = vmatpush1.bf16.msra.mxu0 0
      %958 = vmatprep.subr.bf16.mxu0 0
      %959 = vmatpush1.bf16.msra.mxu0 0
      %960 = vmatprep.subr.bf16.mxu0 0
      %961 = vmatpush1.bf16.msra.mxu0 0
      %962 = vmatprep.subr.bf16.mxu0 0
      %963 = vmatpush1.bf16.msra.mxu0 0
      %964 = vmatprep.subr.bf16.mxu0 0
      %965 = vmatpush1.bf16.msra.mxu0 0
      %966 = vmatprep.subr.bf16.mxu0 0
      %967 = vmatpush1.bf16.msra.mxu0 0
      %968 = vmatprep.subr.bf16.mxu0 0
      %969 = vmatpush1.bf16.msra.mxu0 0
      %970 = vmatprep.subr.bf16.mxu0 0
      %971 = vmatpush1.bf16.msra.mxu0 0
      %972 = vmatprep.subr.bf16.mxu0 0
      %973 = vmatpush1.bf16.msra.mxu0 0
      %974 = vmatprep.subr.bf16.mxu0 0
      %975 = vmatpush1.bf16.msra.mxu0 0
      %976 = vmatprep.subr.bf16.mxu0 0
      %977 = vmatpush1.bf16.msra.mxu0 0
      %978 = vmatprep.subr.bf16.mxu0 0
      %979 = vmatpush1.bf16.msra.mxu0 0
      %980 = vmatprep.subr.bf16.mxu0 0
      %981 = vmatpush1.bf16.msra.mxu0 0
      %982 = vmatprep.subr.bf16.mxu0 0
      %983 = vmatpush1.bf16.msra.mxu0 0
      %984 = vmatprep.mubr.bf16.mxu0 0
      %985 = vmatmul.mubr.bf16.gmra.mrb[0].mxu0 %v950
      %v986 = vpop.f32.mrb[0].mxu0
      %v987 = vadd.f32 %v938, %v986
      %v988 = vpop.f32.mrb[0].mxu0
      %v989 = vpop.f32.mrb[0].mxu0
      %v990 = vpop.f32.mrb[0].mxu0
      %991 = vdwg.mxu0
      %v992 = vld [vmem:[%s5] sm:$0x1]
      %v993 = vunpack.c.l.bf16 %v992
      %v994 = vlaneseq
      %v995 = vshrl.u32 %v994, 7
      %v996 = vsub.s32 0, %v995
      %v997 = vrot.slane %v993, %v996
      %v998 = vadd.f32 %v987, %v997
      %v999 = vadd.f32 %v998, %v479
      %v1000 = vld [vmem:[%s6] sm:$0x1]
      %v1001 = vld [vmem:[%s7] sm:$0x1]
      %v1002 = vunpack.c.l.bf16 %v1000
      %v1003 = vunpack.c.l.bf16 %v1001
      %v1004 = vsel %vm503, %v999, 0.0
      %1005 = vadd.xlane.f32.xlu0 %v1004
      %v1006 = vpop.xlane.xlu0 %1005
      %v1007 = vrcp.pop 32.0
      %v1008 = vmul.f32 %v1006, %v1007
      %v1009 = vsub.f32 %v999, %v1008
      %v1010 = vmul.f32 %v1009, %v1009
      %v1011 = vsel %vm503, %v1010, 0.0
      %1012 = vadd.xlane.f32.xlu0 %v1011
      %v1013 = vpop.xlane.xlu0 %1012
      %v1014 = vmul.f32 %v1013, %v1007
      %v1015 = vadd.f32 %v1014, 1e-12
      %v1016 = vrsqrt.pop %v1015
      %v1017 = vmul.f32 %v1009, %v1016
      %v1018 = vlaneseq
      %v1019 = vshrl.u32 %v1018, 7
      %v1020 = vsub.s32 0, %v1019
      %v1021 = vrot.slane %v1002, %v1020
      %v1022 = vmul.f32 %v1017, %v1021
      %v1023 = vlaneseq
      %v1024 = vshrl.u32 %v1023, 7
      %v1025 = vsub.s32 0, %v1024
      %v1026 = vrot.slane %v1003, %v1025
      %v1027 = vadd.f32 %v1022, %v1026
      %v1028 = vpack.c.bf16 %v1027, %v1027
      %v1029 = vld [vmem:[%s8] sm:$0xf]
      %v1030 = vld [vmem:[%s8 + $0x4] sm:$0xf]
      %v1031 = vld [vmem:[%s8 + $0x8] sm:$0xf]
      %v1032 = vld [vmem:[%s8 + $0xc] sm:$0xf]
      %v1033 = vld [vmem:[%s9] sm:$0x1]
      %v1034 = vunpack.c.l.bf16 %v1033
      %v1035 = vlaneseq
      %v1036 = vshrl.u32 %v1035, 7
      %v1037 = vsub.s32 0, %v1036
      %v1038 = vrot.slane %v1034, %v1037
      %v1043 = vunpack.c.l.b16 %v1029
      %v1044 = vunpack.c.l.b16 %v1030
      %v1045 = vunpack.c.l.b16 %v1031
      %v1046 = vunpack.c.l.b16 %v1032
      %v1047 = vpack.c.b16 %v1044, %v1043
      %v1048 = vpack.c.b16 %v1046, %v1045
      %v1052 = vsel %vm503, %v1028, 0
      %1054 = vmatprep.subr.bf16.mxu0 0
      %1055 = vmatpush1.bf16.msra.mxu0 %v1047
      %1056 = vmatprep.subr.bf16.mxu0 0
      %1057 = vmatpush1.bf16.msra.mxu0 %v1048
      %1058 = vmatprep.subr.bf16.mxu0 0
      %1059 = vmatpush1.bf16.msra.mxu0 0
      %1060 = vmatprep.subr.bf16.mxu0 0
      %1061 = vmatpush1.bf16.msra.mxu0 0
      %1062 = vmatprep.subr.bf16.mxu0 0
      %1063 = vmatpush1.bf16.msra.mxu0 0
      %1064 = vmatprep.subr.bf16.mxu0 0
      %1065 = vmatpush1.bf16.msra.mxu0 0
      %1066 = vmatprep.subr.bf16.mxu0 0
      %1067 = vmatpush1.bf16.msra.mxu0 0
      %1068 = vmatprep.subr.bf16.mxu0 0
      %1069 = vmatpush1.bf16.msra.mxu0 0
      %1070 = vmatprep.subr.bf16.mxu0 0
      %1071 = vmatpush1.bf16.msra.mxu0 0
      %1072 = vmatprep.subr.bf16.mxu0 0
      %1073 = vmatpush1.bf16.msra.mxu0 0
      %1074 = vmatprep.subr.bf16.mxu0 0
      %1075 = vmatpush1.bf16.msra.mxu0 0
      %1076 = vmatprep.subr.bf16.mxu0 0
      %1077 = vmatpush1.bf16.msra.mxu0 0
      %1078 = vmatprep.subr.bf16.mxu0 0
      %1079 = vmatpush1.bf16.msra.mxu0 0
      %1080 = vmatprep.subr.bf16.mxu0 0
      %1081 = vmatpush1.bf16.msra.mxu0 0
      %1082 = vmatprep.subr.bf16.mxu0 0
      %1083 = vmatpush1.bf16.msra.mxu0 0
      %1084 = vmatprep.subr.bf16.mxu0 0
      %1085 = vmatpush1.bf16.msra.mxu0 0
      %1086 = vmatprep.mubr.bf16.mxu0 0
      %1087 = vmatmul.mubr.bf16.gmra.mrb[0].mxu0 %v1052
      %v1088 = vpop.f32.mrb[0].mxu0
      %v1089 = vadd.f32 %v1038, %v1088
      %v1090 = vpop.f32.mrb[0].mxu0
      %v1091 = vpop.f32.mrb[0].mxu0
      %v1092 = vpop.f32.mrb[0].mxu0
      %1093 = vdwg.mxu0
      %v1094 = vmul.f32 %v1089, 0.5
      %v1095 = vmul.f32 %v1089, 0.044715
      %v1096 = vmul.f32 %v1095, %v1089
      %v1097 = vmul.f32 %v1096, %v1089
      %v1098 = vadd.f32 %v1089, %v1097
      %v1099 = vmul.f32 %v1098, 0.7978846
      %v1100 = vtanh.pop %v1099
      %v1101 = vadd.f32 %v1100, 1.0
      %v1102 = vmul.f32 %v1094, %v1101
      %v1103 = vpack.c.bf16 %v1102, %v1102
      %v1104 = vld [vmem:[%s10] sm:$0xf]
      %v1105 = vld [vmem:[%s10 + $0x4] sm:$0xf]
      %v1106 = vld [vmem:[%s10 + $0x8] sm:$0xf]
      %v1107 = vld [vmem:[%s10 + $0xc] sm:$0xf]
      %v1108 = vld [vmem:[%s10 + $0x10] sm:$0xf]
      %v1109 = vld [vmem:[%s10 + $0x14] sm:$0xf]
      %v1110 = vld [vmem:[%s10 + $0x18] sm:$0xf]
      %v1111 = vld [vmem:[%s10 + $0x1c] sm:$0xf]
      %v1112 = vld [vmem:[%s11] sm:$0x1]
      %v1113 = vunpack.c.l.bf16 %v1112
      %v1114 = vlaneseq
      %v1115 = vshrl.u32 %v1114, 7
      %v1116 = vsub.s32 0, %v1115
      %v1117 = vrot.slane %v1113, %v1116
      %v1126 = vunpack.c.l.b16 %v1104
      %v1127 = vunpack.c.l.b16 %v1105
      %v1128 = vunpack.c.l.b16 %v1106
      %v1129 = vunpack.c.l.b16 %v1107
      %v1130 = vunpack.c.l.b16 %v1108
      %v1131 = vunpack.c.l.b16 %v1109
      %v1132 = vunpack.c.l.b16 %v1110
      %v1133 = vunpack.c.l.b16 %v1111
      %v1134 = vpack.c.b16 %v1127, %v1126
      %v1135 = vpack.c.b16 %v1129, %v1128
      %v1136 = vpack.c.b16 %v1131, %v1130
      %v1137 = vpack.c.b16 %v1133, %v1132
      %vm1142 = vcmask 523264
      %v1144 = vsel %vm1142, %v1103, 0
      %1146 = vmatprep.subr.bf16.mxu0 0
      %1147 = vmatpush1.bf16.msra.mxu0 %v1134
      %1148 = vmatprep.subr.bf16.mxu0 0
      %1149 = vmatpush1.bf16.msra.mxu0 %v1135
      %1150 = vmatprep.subr.bf16.mxu0 0
      %1151 = vmatpush1.bf16.msra.mxu0 %v1136
      %1152 = vmatprep.subr.bf16.mxu0 0
      %1153 = vmatpush1.bf16.msra.mxu0 %v1137
      %1154 = vmatprep.subr.bf16.mxu0 0
      %1155 = vmatpush1.bf16.msra.mxu0 0
      %1156 = vmatprep.subr.bf16.mxu0 0
      %1157 = vmatpush1.bf16.msra.mxu0 0
      %1158 = vmatprep.subr.bf16.mxu0 0
      %1159 = vmatpush1.bf16.msra.mxu0 0
      %1160 = vmatprep.subr.bf16.mxu0 0
      %1161 = vmatpush1.bf16.msra.mxu0 0
      %1162 = vmatprep.subr.bf16.mxu0 0
      %1163 = vmatpush1.bf16.msra.mxu0 0
      %1164 = vmatprep.subr.bf16.mxu0 0
      %1165 = vmatpush1.bf16.msra.mxu0 0
      %1166 = vmatprep.subr.bf16.mxu0 0
      %1167 = vmatpush1.bf16.msra.mxu0 0
      %1168 = vmatprep.subr.bf16.mxu0 0
      %1169 = vmatpush1.bf16.msra.mxu0 0
      %1170 = vmatprep.subr.bf16.mxu0 0
      %1171 = vmatpush1.bf16.msra.mxu0 0
      %1172 = vmatprep.subr.bf16.mxu0 0
      %1173 = vmatpush1.bf16.msra.mxu0 0
      %1174 = vmatprep.subr.bf16.mxu0 0
      %1175 = vmatpush1.bf16.msra.mxu0 0
      %1176 = vmatprep.subr.bf16.mxu0 0
      %1177 = vmatpush1.bf16.msra.mxu0 0
      %1178 = vmatprep.mubr.bf16.mxu0 0
      %1179 = vmatmul.mubr.bf16.gmra.mrb[0].mxu0 %v1144
      %v1180 = vpop.f32.mrb[0].mxu0
      %v1181 = vadd.f32 %v1117, %v1180
      %v1182 = vpop.f32.mrb[0].mxu0
      %v1183 = vpop.f32.mrb[0].mxu0
      %v1184 = vpop.f32.mrb[0].mxu0
      %1185 = vdwg.mxu0
      %v1186 = vadd.f32 %v1181, %v1027
      %v1187 = vld [vmem:[%s12] sm:$0x1]
      %v1188 = vld [vmem:[%s13] sm:$0x1]
      %v1189 = vunpack.c.l.bf16 %v1187
      %v1190 = vunpack.c.l.bf16 %v1188
      %v1191 = vsel %vm503, %v1186, 0.0
      %1192 = vadd.xlane.f32.xlu0 %v1191
      %v1193 = vpop.xlane.xlu0 %1192
      %v1194 = vmul.f32 %v1193, %v1007
      %v1195 = vsub.f32 %v1186, %v1194
      %v1196 = vmul.f32 %v1195, %v1195
      %v1197 = vsel %vm503, %v1196, 0.0
      %1198 = vadd.xlane.f32.xlu0 %v1197
      %v1199 = vpop.xlane.xlu0 %1198
      %v1200 = vmul.f32 %v1199, %v1007
      %v1201 = vadd.f32 %v1200, 1e-12
      %v1202 = vrsqrt.pop %v1201
      %v1203 = vmul.f32 %v1195, %v1202
      %v1204 = vlaneseq
      %v1205 = vshrl.u32 %v1204, 7
      %v1206 = vsub.s32 0, %v1205
      %v1207 = vrot.slane %v1189, %v1206
      %v1208 = vmul.f32 %v1203, %v1207
      %v1209 = vlaneseq
      %v1210 = vshrl.u32 %v1209, 7
      %v1211 = vsub.s32 0, %v1210
      %v1212 = vrot.slane %v1190, %v1211
      %v1213 = vadd.f32 %v1208, %v1212
      %v1214 = vpack.c.bf16 %v1213, %v1213
      %vm1215 = vcmask 257024
      %1216 = vst.msk [vmem:[%s476] sm:$0xf] %vm1215, %v1214
      %p1217 = scmp.lt.s32.totalorder %s25, 1
      %s1218 = scalar_select %p1217, %s25, 1
      %s1219 = smul.addr %s1218, 4
      %s1220 = scalar_lea.vmem %s14, %s1219
      // Predicated region
      $region77: #{bert_forward.5} parent=75 // pred_check
        %p1221 = pneg %p347
      $region78: #{bert_forward.5} parent=75 // pred_check_branch
        %1223 = sbr.rel (%p1221) target = $region80
      $region79: #{bert_forward.5} parent=75 // pred_region
        _
      $region80: #{bert_forward.5} parent=75 // pred_fallthru
        _
    $region76: #{bert_forward.5} parent=5 // pred_fallthru
      _
    %p1224 = scmp.le.s32.totalorder 2, %s20
    // Predicated region
    $region81: #{bert_forward.5} parent=5 // pred_check
      %p1225 = pneg %p1224
    $region82: #{bert_forward.5} parent=5 // pred_check_branch
      %1227 = sbr.rel (%p1225) target = $region84
    $region83: #{bert_forward.5} parent=5 // pred_region
      %s1228 = ssub.s32 %s20, 2
      // Predicated region
      $region85: #{bert_forward.5} parent=83 // pred_check
        %p1229 = pneg %p353
      $region86: #{bert_forward.5} parent=83 // pred_check_branch
        %1231 = sbr.rel (%p1229) target = $region88
      $region87: #{bert_forward.5} parent=83 // pred_region
        %p1232 = scmp.lt.s32.totalorder %s26, 1
        %s1233 = scalar_select %p1232, %s26, 1
        %s1234 = smul.addr %s1233, 4
        %s1235 = scalar_lea.vmem %s14, %s1234
      $region88: #{bert_forward.5} parent=83 // pred_fallthru
        _
    $region84: #{bert_forward.5} parent=5 // pred_fallthru
      _
  $region6: #{bert_forward.5} parent=0 // loop_footer
    %s24 = sadd.s32 1, %s20
  $region7: #{bert_forward.5} parent=0 // loop_footer_branch
    %19 = sbr.rel target = $region3
  $region8: #{bert_forward.5} parent=0 // loop_exit
    _

</llo_original>
